<compile_context>
chip_gen: v7x
topology: tpu7x:2x2x1
jax: 0.10.0
libtpu: 0.0.40
codegen_flags: <defaults>
</compile_context>

<pallas_src>
import numpy as np
import jax
import jax.numpy as jnp
from jax.experimental import pallas as pl
from jax.experimental.pallas import tpu as pltpu


# ----------------------------------------------------------------------------
# Kernels
# ----------------------------------------------------------------------------
def _fused_kernel_f32out(mat1_ref, mat2_ref, cvec_ref, add_ref, out_ref):
    """f32 output: out_ref doubles as the accumulator (output-resident over k)."""
    k = pl.program_id(2)

    @pl.when(k == 0)
    def _init():
        out_ref[...] = jnp.zeros_like(out_ref)

    out_ref[...] += jnp.dot(mat1_ref[...], mat2_ref[...],
                            preferred_element_type=jnp.float32)

    @pl.when(k == pl.num_programs(2) - 1)
    def _epilogue():
        a = add_ref[...].astype(jnp.float32)
        out_ref[...] = (out_ref[...] + cvec_ref[...]) * a


def _fused_kernel_scratch(mat1_ref, mat2_ref, cvec_ref, add_ref, out_ref,
                          acc_ref):
    """Non-f32 output: accumulate into f32 VMEM scratch, cast once at the end."""
    k = pl.program_id(2)

    @pl.when(k == 0)
    def _init():
        acc_ref[...] = jnp.zeros_like(acc_ref)

    acc_ref[...] += jnp.dot(mat1_ref[...], mat2_ref[...],
                            preferred_element_type=jnp.float32)

    @pl.when(k == pl.num_programs(2) - 1)
    def _epilogue():
        a = add_ref[...].astype(jnp.float32)
        out_ref[...] = ((acc_ref[...] + cvec_ref[...]) * a).astype(out_ref.dtype)


# ----------------------------------------------------------------------------
# Tile selection helpers
# ----------------------------------------------------------------------------
def _pick_tile(dim, cap, quanta=(128,)):
    """Largest tile <= cap that divides dim, aligned to one of `quanta`
    (tried in order).  Falls back to the full dim (always a legal block)."""
    cap = min(cap, dim)
    for q in quanta:
        t = (cap // q) * q
        while t >= q:
            if dim % t == 0:
                return t
            t -= q
    # TODO(synk): masked edge tiles (pl.cdiv grid) for huge non-128-divisible dims.
    return dim


def _step_vmem_bytes(tm, tn, tk, in_bpe, out_bpe, add_rows, add_cols, add_bpe,
                     use_scratch):
    buf = 2 * (tm * tk + tk * tn) * in_bpe        # double-buffered mat1 / mat2
    buf += 2 * tm * tn * out_bpe                  # double-buffered output tile
    buf += 2 * tn * 4                             # (1.2*bias + 1) vector
    buf += 2 * add_rows * add_cols * add_bpe      # add_input tile
    if use_scratch:
        buf += tm * tn * 4                        # f32 accumulator scratch
    return buf


# ----------------------------------------------------------------------------
# Wrapper
# ----------------------------------------------------------------------------
def addmm_view_mul_add(mat1, mat2, bias, new_shape, add_input, *,
                       max_tm=1024, max_tn=1024, max_tk=1024,
                       use_bf16_mxu=False,
                       vmem_step_budget=20 * 1024 * 1024):
    """Pallas-backed equivalent of the PyTorch module's forward."""
    mat1 = jnp.asarray(mat1)
    mat2 = jnp.asarray(mat2)
    add_input = jnp.asarray(add_input)

    M, K = mat1.shape
    K2, N = mat2.shape
    assert K == K2, "inner dims must match"
    new_shape = tuple(int(s) for s in new_shape)
    assert int(np.prod(new_shape)) == M * N, "new_shape must be a view of (M, N)"

    out_dtype = jnp.result_type(mat1.dtype, mat2.dtype, bias.dtype,
                                add_input.dtype)

    # Optional bf16 MXU path (numerics differ slightly from the f32 reference).
    if use_bf16_mxu and mat1.dtype == jnp.float32 and mat2.dtype == jnp.float32:
        mat1 = mat1.astype(jnp.bfloat16)
        mat2 = mat2.astype(jnp.bfloat16)

    # Folded epilogue vector: 1.2 * bias + 1   (tiny, computed once, f32).
    bias_vec = jnp.broadcast_to(jnp.asarray(bias).reshape(-1).astype(jnp.float32),
                                (N,))
    cvec = (jnp.float32(1.2) * bias_vec + jnp.float32(1.0)).reshape(1, N)

    # ---- Classify add_input's broadcast pattern against new_shape -----------
    add_shape = tuple(int(d) for d in add_input.shape)
    nd = len(new_shape)
    padded = (1,) * (nd - len(add_shape)) + add_shape   # broadcast-padded shape
    last_is_n = nd >= 1 and new_shape[-1] == N
    varies_last = last_is_n and padded[-1] != 1
    varies_lead = any(p != 1 for p in padded[:-1])

    if all(p == 1 for p in padded) or (last_is_n and not varies_lead):
        add_mode = "col"       # value depends only on the N axis (or scalar)
    elif last_is_n and not varies_last:
        add_mode = "row"       # value depends only on the leading (M) axes
    else:
        add_mode = "full"      # general: materialize once
    add_bpe = jnp.dtype(add_input.dtype).itemsize

    # ---- Tile selection with a per-step VMEM budget --------------------------
    in_bpe = jnp.dtype(mat1.dtype).itemsize
    out_bpe = jnp.dtype(out_dtype).itemsize
    use_scratch = (out_dtype != jnp.float32)

    tm = _pick_tile(M, max_tm, quanta=(128, 8))
    tn = _pick_tile(N, max_tn, quanta=(128,))
    tk = _pick_tile(K, max_tk, quanta=(128,))

    def _add_block(tm_, tn_):
        if add_mode == "col":
            return 1, tn_
        if add_mode == "row":
            return tm_, 1
        return tm_, tn_

    while True:
        ar, ac = _add_block(tm, tn)
        if _step_vmem_bytes(tm, tn, tk, in_bpe, out_bpe, ar, ac, add_bpe,
                            use_scratch) <= vmem_step_budget:
            break
        # Shrink the largest shrinkable axis; halving preserves divisibility.
        cands = []
        if tk % 256 == 0:
            cands.append(("k", tk))
        if tn % 256 == 0:
            cands.append(("n", tn))
        if tm % 256 == 0 or (tm % 16 == 0 and tm > 8):
            cands.append(("m", tm))
        if not cands:
            break  # awkward shape: rely on the raised vmem limit
        ax = max(cands, key=lambda c: c[1])[0]
        if ax == "k":
            tk //= 2
        elif ax == "n":
            tn //= 2
        else:
            tm //= 2

    gm, gn, gk = M // tm, N // tn, K // tk

    # ---- add_input staging + BlockSpec ---------------------------------------
    if add_mode == "col":
        add_2d = jnp.broadcast_to(add_input.reshape(1, -1), (1, N))
        add_spec = pl.BlockSpec((1, tn), lambda i, j, k: (0, j))
    elif add_mode == "row":
        lead = new_shape[:-1] if nd > 1 else (1,)
        add_2d = jnp.broadcast_to(add_input, tuple(lead) + (1,)).reshape(M, 1)
        add_spec = pl.BlockSpec((tm, 1), lambda i, j, k: (i, 0))
    else:
        add_2d = jnp.broadcast_to(add_input, new_shape).reshape(M, N)
        add_spec = pl.BlockSpec((tm, tn), lambda i, j, k: (i, j))

    kernel = _fused_kernel_scratch if use_scratch else _fused_kernel_f32out
    scratch_shapes = [pltpu.VMEM((tm, tn), jnp.float32)] if use_scratch else []

    out_flat = pl.pallas_call(
        kernel,
        out_shape=jax.ShapeDtypeStruct((M, N), out_dtype),
        grid_spec=pltpu.PrefetchScalarGridSpec(
            num_scalar_prefetch=0,
            grid=(gm, gn, gk),
            in_specs=[
                pl.BlockSpec((tm, tk), lambda i, j, k: (i, k)),   # mat1
                pl.BlockSpec((tk, tn), lambda i, j, k: (k, j)),   # mat2
                pl.BlockSpec((1, tn), lambda i, j, k: (0, j)),    # 1.2*bias + 1
                add_spec,                                          # add_input
            ],
            out_specs=pl.BlockSpec((tm, tn), lambda i, j, k: (i, j)),
            scratch_shapes=scratch_shapes,
        ),
        compiler_params=pltpu.CompilerParams(
            dimension_semantics=("parallel", "parallel", "arbitrary"),
            vmem_limit_bytes=48 * 1024 * 1024,
        ),
    )(mat1, mat2, cvec, add_2d)

    return out_flat.reshape(new_shape)


# ----------------------------------------------------------------------------
# Self-test
# ----------------------------------------------------------------------------
if __name__ == "__main__":
    M, K, N = 256, 512, 256
    new_shape = (2, 128, N)

    key = jax.random.PRNGKey(0)
    k1, k2, k3, k4, k5, k6 = jax.random.split(key, 6)
    mat1 = jax.random.normal(k1, (M, K), dtype=jnp.float32)
    mat2 = jax.random.normal(k2, (K, N), dtype=jnp.float32)
    bias = jax.random.normal(k3, (N,), dtype=jnp.float32)
    add_full = jax.random.normal(k4, new_shape, dtype=jnp.float32)   # full
    add_col = jax.random.normal(k5, (1, 1, N), dtype=jnp.float32)    # col bcast
    add_row = jax.random.normal(k6, (2, 128, 1), dtype=jnp.float32)  # row bcast

    def ref_fn(m1, m2, b, add_input):
        mm = jnp.dot(m1.astype(jnp.float32), m2.astype(jnp.float32),
                     preferred_element_type=jnp.float32,
                     precision=jax.lax.Precision.HIGHEST)
        addmm = jnp.float32(1.2) * b.astype(jnp.float32) + mm
        view = addmm.reshape(new_shape)
        a = add_input.astype(jnp.float32)
        return view * a + a

    # f32 path (output-resident accumulator), all broadcast modes, both with
    # the default big tiles and with small caps to exercise real M/N/K tiling.
    for add_input in (add_full, add_col, add_row):
        for caps in ({}, dict(max_tm=128, max_tn=128, max_tk=128)):
            out = addmm_view_mul_add(mat1, mat2, bias, new_shape, add_input,
                                     **caps)
            out = jax.block_until_ready(out)
            ref = ref_fn(mat1, mat2, bias, add_input)
            np.testing.assert_allclose(np.asarray(out), np.asarray(ref),
                                       rtol=1e-4, atol=1e-4)

    # bf16 path (exercises the f32-scratch kernel and the final cast).
    m1b = mat1.astype(jnp.bfloat16)
    m2b = mat2.astype(jnp.bfloat16)
    bb = bias.astype(jnp.bfloat16)
    ab = add_full.astype(jnp.bfloat16)
    out_b = jax.block_until_ready(
        addmm_view_mul_add(m1b, m2b, bb, new_shape, ab))
    ref_b = ref_fn(m1b, m2b, bb, ab)
    np.testing.assert_allclose(np.asarray(out_b, dtype=np.float32),
                               np.asarray(ref_b), rtol=2e-2, atol=2e-2)

    print("KERNEL_OK")
</pallas_src>

<mosaic_0001>
module attributes {stable_mosaic.version = 11 : i64} {
  func.func @_fused_kernel_f32out(%arg0: i32, %arg1: i32, %arg2: i32, %arg3: memref<256x512xf32, #tpu.memory_space<vmem>>, %arg4: memref<512x256xf32, #tpu.memory_space<vmem>>, %arg5: memref<1x256xf32, #tpu.memory_space<vmem>>, %arg6: memref<256x256xf32, #tpu.memory_space<vmem>>, %arg7: memref<256x256xf32, #tpu.memory_space<vmem>>) attributes {dimension_semantics = [#tpu.dimension_semantics<parallel>, #tpu.dimension_semantics<parallel>, #tpu.dimension_semantics<arbitrary>], iteration_bounds = array<i64: 1, 1, 1>, scalar_prefetch = 0 : i64, scratch_operands = 0 : i64, tpu.core_type = #tpu.core_type<tc>, window_params = [{transform_indices = @transform_0, window_bounds = array<i64: 256, 512>}, {transform_indices = @transform_1, window_bounds = array<i64: 512, 256>}, {transform_indices = @transform_2, window_bounds = array<i64: 1, 256>}, {transform_indices = @transform_3, window_bounds = array<i64: 256, 256>}, {transform_indices = @transform_4, window_bounds = array<i64: 256, 256>}]} {
    %c0_i32 = arith.constant 0 : i32
    %0 = arith.cmpi eq, %arg2, %c0_i32 : i32
    %1 = arith.extui %0 : i1 to i32
    %c0_i32_0 = arith.constant 0 : i32
    %2 = arith.cmpi ne, %1, %c0_i32_0 : i32
    scf.if %2 {
      %cst_10 = arith.constant 0.000000e+00 : f32
      %12 = vector.broadcast %cst_10 : f32 to vector<256x256xf32>
      %c0_11 = arith.constant 0 : index
      %c0_12 = arith.constant 0 : index
      %13 = vector.load %arg7[%c0_11, %c0_12] : memref<256x256xf32, #tpu.memory_space<vmem>>, vector<256x256xf32>
      tpu.vector_store %arg7[%c0_11, %c0_12], %12 {strides = array<i32>} : memref<256x256xf32, #tpu.memory_space<vmem>>, vector<256x256xf32>,
    } else {
    }
    %c0 = arith.constant 0 : index
    %c0_1 = arith.constant 0 : index
    %3 = vector.load %arg7[%c0, %c0_1] : memref<256x256xf32, #tpu.memory_space<vmem>>, vector<256x256xf32>
    %c0_2 = arith.constant 0 : index
    %c0_3 = arith.constant 0 : index
    %4 = vector.load %arg3[%c0_2, %c0_3] : memref<256x512xf32, #tpu.memory_space<vmem>>, vector<256x512xf32>
    %c0_4 = arith.constant 0 : index
    %c0_5 = arith.constant 0 : index
    %5 = vector.load %arg4[%c0_4, %c0_5] : memref<512x256xf32, #tpu.memory_space<vmem>>, vector<512x256xf32>
    %cst = arith.constant dense<0.000000e+00> : vector<256x256xf32>
    %6 = tpu.matmul %4, %5, %cst {dimension_numbers = #tpu.dot_dimension_numbers<[1], [0], [0], [1], [0, 0, 1, 1], [], []>} : vector<256x512xf32>, vector<512x256xf32>, vector<256x256xf32> -> vector<256x256xf32>
    %7 = arith.addf %3, %6 : vector<256x256xf32>
    %c0_6 = arith.constant 0 : index
    %c0_7 = arith.constant 0 : index
    %8 = vector.load %arg7[%c0_6, %c0_7] : memref<256x256xf32, #tpu.memory_space<vmem>>, vector<256x256xf32>
    tpu.vector_store %arg7[%c0_6, %c0_7], %7 {strides = array<i32>} : memref<256x256xf32, #tpu.memory_space<vmem>>, vector<256x256xf32>,
    %c0_i32_8 = arith.constant 0 : i32
    %9 = arith.cmpi eq, %arg2, %c0_i32_8 : i32
    %10 = arith.extui %9 : i1 to i32
    %c0_i32_9 = arith.constant 0 : i32
    %11 = arith.cmpi ne, %10, %c0_i32_9 : i32
    scf.if %11 {
      %c0_10 = arith.constant 0 : index
      %c0_11 = arith.constant 0 : index
      %12 = vector.load %arg6[%c0_10, %c0_11] : memref<256x256xf32, #tpu.memory_space<vmem>>, vector<256x256xf32>
      %c0_12 = arith.constant 0 : index
      %c0_13 = arith.constant 0 : index
      %13 = vector.load %arg7[%c0_12, %c0_13] : memref<256x256xf32, #tpu.memory_space<vmem>>, vector<256x256xf32>
      %c0_14 = arith.constant 0 : index
      %c0_15 = arith.constant 0 : index
      %14 = vector.load %arg5[%c0_14, %c0_15] : memref<1x256xf32, #tpu.memory_space<vmem>>, vector<1x256xf32>
      %15 = vector.broadcast %14 : vector<1x256xf32> to vector<256x256xf32>
      %16 = arith.addf %13, %15 : vector<256x256xf32>
      %17 = arith.mulf %16, %12 : vector<256x256xf32>
      %c0_16 = arith.constant 0 : index
      %c0_17 = arith.constant 0 : index
      %18 = vector.load %arg7[%c0_16, %c0_17] : memref<256x256xf32, #tpu.memory_space<vmem>>, vector<256x256xf32>
      tpu.vector_store %arg7[%c0_16, %c0_17], %17 {strides = array<i32>} : memref<256x256xf32, #tpu.memory_space<vmem>>, vector<256x256xf32>,
    } else {
    }
    return
  }
  func.func @transform_0(%arg0: i32, %arg1: i32, %arg2: i32) -> (i32, i32) {
    %c0_i32 = arith.constant 0 : i32
    return %arg0, %arg2 : i32, i32
  }
  func.func @transform_1(%arg0: i32, %arg1: i32, %arg2: i32) -> (i32, i32) {
    %c0_i32 = arith.constant 0 : i32
    return %arg2, %arg1 : i32, i32
  }
  func.func @transform_2(%arg0: i32, %arg1: i32, %arg2: i32) -> (i32, i32) {
    %c0_i32 = arith.constant 0 : i32
    %c0_i32_0 = arith.constant 0 : i32
    return %c0_i32, %arg1 : i32, i32
  }
  func.func @transform_3(%arg0: i32, %arg1: i32, %arg2: i32) -> (i32, i32) {
    %c0_i32 = arith.constant 0 : i32
    return %arg0, %arg1 : i32, i32
  }
  func.func @transform_4(%arg0: i32, %arg1: i32, %arg2: i32) -> (i32, i32) {
    %c0_i32 = arith.constant 0 : i32
    return %arg0, %arg1 : i32, i32
  }
}

</mosaic_0001>

<llo_original>
// kernel: tpu_custom_call.1
$region0: #{tpu_custom_call.1}
  #allocation0 [shape = 'u32[]', space=smem, size = 0x4, offset = 0x4, fixed_abs, tag = 'smem constant byte address 0x4 - core index']
  #allocation1 [shape = 'u32[144,128]{1,0:T(1,128)}', space=vmem, size = 0x12000, scoped, tag = 'internal scratch']
  %s0 = inlined_call_operand.hbm [shape: f32[256,512], index: 0, kind: input, shape index: {}]
  %s1 = inlined_call_operand.hbm [shape: f32[512,256], index: 1, kind: input, shape index: {}]
  %s2 = inlined_call_operand.vmem [shape: f32[1,256], index: 2, kind: input, shape index: {}]
  %s3 = inlined_call_operand.hbm [shape: f32[256,256], index: 3, kind: input, shape index: {}]
  %s4 = inlined_call_operand.hbm [shape: f32[256,256], index: 4, kind: output, shape index: {}]
  %s5 = sld [smem:[#allocation0]]
  $region46: #{tpu_custom_call.1} parent=0
    _
  %s7 = ssub.s32 1, %s5
  %s8 = scalar_select 0, %s7, %s5
  $region1: #{tpu_custom_call.1} parent=0
    #allocation2 [shape = 'u8[524288]{0}', space=vmem, size = 0x80000, scoped, tag = 'input window, operand 0, single buffered']
    #allocation3 [shape = 's32[1]{0}', space=sflag, size = 0x4, scoped, tag = 'scoped memory for tpu_custom_call.1']
    #allocation4 [shape = 's32[1]{0}', space=sflag, size = 0x4, scoped, tag = 'scoped memory for tpu_custom_call.1']
    #allocation5 [shape = 'u8[524288]{0}', space=vmem, size = 0x80000, scoped, tag = 'input window, operand 1, single buffered']
    #allocation6 [shape = 's32[1]{0}', space=sflag, size = 0x4, scoped, tag = 'scoped memory for tpu_custom_call.1']
    #allocation7 [shape = 'u8[262144]{0}', space=vmem, size = 0x40000, scoped, tag = 'input window, operand 3, single buffered']
    #allocation8 [shape = 'u8[262144]{0}', space=vmem, size = 0x40000, scoped, tag = 'output window, operand 0, single buffered']
    %9 = vsyncpa [#allocation3], 0
    %10 = vsyncpa [#allocation6], 0
    %11 = vsyncpa [#allocation4], 0
    // Predicated region
    $region2: #{tpu_custom_call.1} parent=1 // pred_check
      _
    $region3: #{tpu_custom_call.1} parent=1 // pred_check_branch
      %13 = sbr.rel (0) target = $region5
    $region4: #{tpu_custom_call.1} parent=1 // pred_region
      %s15 = ssub.s32 16384, 16384
      %16 = vsyncadd [#allocation3], %s15
      %s17 = sshll.u32 [#allocation2], 4
      %s18 = int_to_ptr.vmem [resolvable:$true] %s17
      %23 = dma.hbm_to_vmem [thread:$0]  %s0, 16384, %s18, [#allocation3], 512, 512, 32
    $region5: #{tpu_custom_call.1} parent=1 // pred_fallthru
      _
    // Predicated region
    $region6: #{tpu_custom_call.1} parent=1 // pred_check
      _
    $region7: #{tpu_custom_call.1} parent=1 // pred_check_branch
      %25 = sbr.rel (0) target = $region9
    $region8: #{tpu_custom_call.1} parent=1 // pred_region
      %s27 = ssub.s32 16384, 16384
      %28 = vsyncadd [#allocation6], %s27
      %s29 = sshll.u32 [#allocation5], 4
      %s30 = int_to_ptr.vmem [resolvable:$true] %s29
      %35 = dma.hbm_to_vmem [thread:$0]  %s1, 16384, %s30, [#allocation6], 256, 256, 16
    $region9: #{tpu_custom_call.1} parent=1 // pred_fallthru
      _
    // Predicated region
    $region10: #{tpu_custom_call.1} parent=1 // pred_check
      _
    $region11: #{tpu_custom_call.1} parent=1 // pred_check_branch
      %37 = sbr.rel (0) target = $region13
    $region12: #{tpu_custom_call.1} parent=1 // pred_region
      _
    $region13: #{tpu_custom_call.1} parent=1 // pred_fallthru
      _
    // Predicated region
    $region14: #{tpu_custom_call.1} parent=1 // pred_check
      _
    $region15: #{tpu_custom_call.1} parent=1 // pred_check_branch
      %39 = sbr.rel (0) target = $region17
    $region16: #{tpu_custom_call.1} parent=1 // pred_region
      %s41 = ssub.s32 8192, 8192
      %42 = vsyncadd [#allocation6], %s41
      %s43 = sshll.u32 [#allocation7], 4
      %s44 = int_to_ptr.vmem [resolvable:$true] %s43
      %49 = dma.hbm_to_vmem [thread:$0]  %s3, 8192, %s44, [#allocation6], 256, 256, 16
    $region17: #{tpu_custom_call.1} parent=1 // pred_fallthru
      _
    // Predicated region
    $region18: #{tpu_custom_call.1} parent=1 // pred_check
      _
    $region19: #{tpu_custom_call.1} parent=1 // pred_check_branch
      %51 = sbr.rel (0) target = $region21
    $region20: #{tpu_custom_call.1} parent=1 // pred_region
      %52 = dma.done [#allocation3], 16384
    $region21: #{tpu_custom_call.1} parent=1 // pred_fallthru
      _
    // Predicated region
    $region22: #{tpu_custom_call.1} parent=1 // pred_check
      _
    $region23: #{tpu_custom_call.1} parent=1 // pred_check_branch
      %54 = sbr.rel (0) target = $region25
    $region24: #{tpu_custom_call.1} parent=1 // pred_region
      %55 = dma.done [#allocation6], 16384
    $region25: #{tpu_custom_call.1} parent=1 // pred_fallthru
      _
    // Predicated region
    $region26: #{tpu_custom_call.1} parent=1 // pred_check
      _
    $region27: #{tpu_custom_call.1} parent=1 // pred_check_branch
      %57 = sbr.rel (0) target = $region29
    $region28: #{tpu_custom_call.1} parent=1 // pred_region
      %58 = dma.done [#allocation6], 8192
    $region29: #{tpu_custom_call.1} parent=1 // pred_fallthru
      _
    %p59 = scmp.eq.s32.totalorder 0, 0
    // Predicated region
    $region30: #{tpu_custom_call.1} parent=1 // pred_check
      %p60 = pneg %p59
    $region31: #{tpu_custom_call.1} parent=1 // pred_check_branch
      %62 = sbr.rel (%p60) target = $region33
    $region32: #{tpu_custom_call.1} parent=1 // pred_region
      %63 = vst [vmem:[#allocation8] sm:$0xff] 0.0
      %64 = vst [vmem:[#allocation8 + $0x8] sm:$0xff] 0.0
      %65 = vst [vmem:[#allocation8 + $0x10] sm:$0xff] 0.0
      %66 = vst [vmem:[#allocation8 + $0x18] sm:$0xff] 0.0
      %67 = vst [vmem:[#allocation8 + $0x20] sm:$0xff] 0.0
      %68 = vst [vmem:[#allocation8 + $0x28] sm:$0xff] 0.0
      %69 = vst [vmem:[#allocation8 + $0x30] sm:$0xff] 0.0
      %70 = vst [vmem:[#allocation8 + $0x38] sm:$0xff] 0.0
      %71 = vst [vmem:[#allocation8 + $0x40] sm:$0xff] 0.0
      %72 = vst [vmem:[#allocation8 + $0x48] sm:$0xff] 0.0
      %73 = vst [vmem:[#allocation8 + $0x50] sm:$0xff] 0.0
      %74 = vst [vmem:[#allocation8 + $0x58] sm:$0xff] 0.0
      %75 = vst [vmem:[#allocation8 + $0x60] sm:$0xff] 0.0
      %76 = vst [vmem:[#allocation8 + $0x68] sm:$0xff] 0.0
      %77 = vst [vmem:[#allocation8 + $0x70] sm:$0xff] 0.0
      %78 = vst [vmem:[#allocation8 + $0x78] sm:$0xff] 0.0
      %79 = vst [vmem:[#allocation8 + $0x80] sm:$0xff] 0.0
      %80 = vst [vmem:[#allocation8 + $0x88] sm:$0xff] 0.0
      %81 = vst [vmem:[#allocation8 + $0x90] sm:$0xff] 0.0
      %82 = vst [vmem:[#allocation8 + $0x98] sm:$0xff] 0.0
      %83 = vst [vmem:[#allocation8 + $0xa0] sm:$0xff] 0.0
      %84 = vst [vmem:[#allocation8 + $0xa8] sm:$0xff] 0.0
      %85 = vst [vmem:[#allocation8 + $0xb0] sm:$0xff] 0.0
      %86 = vst [vmem:[#allocation8 + $0xb8] sm:$0xff] 0.0
      %87 = vst [vmem:[#allocation8 + $0xc0] sm:$0xff] 0.0
      %88 = vst [vmem:[#allocation8 + $0xc8] sm:$0xff] 0.0
      %89 = vst [vmem:[#allocation8 + $0xd0] sm:$0xff] 0.0
      %90 = vst [vmem:[#allocation8 + $0xd8] sm:$0xff] 0.0
      %91 = vst [vmem:[#allocation8 + $0xe0] sm:$0xff] 0.0
      %92 = vst [vmem:[#allocation8 + $0xe8] sm:$0xff] 0.0
      %93 = vst [vmem:[#allocation8 + $0xf0] sm:$0xff] 0.0
      %94 = vst [vmem:[#allocation8 + $0xf8] sm:$0xff] 0.0
      %95 = vst [vmem:[#allocation8 + $0x100] sm:$0xff] 0.0
      %96 = vst [vmem:[#allocation8 + $0x108] sm:$0xff] 0.0
      %97 = vst [vmem:[#allocation8 + $0x110] sm:$0xff] 0.0
      %98 = vst [vmem:[#allocation8 + $0x118] sm:$0xff] 0.0
      %99 = vst [vmem:[#allocation8 + $0x120] sm:$0xff] 0.0
      %100 = vst [vmem:[#allocation8 + $0x128] sm:$0xff] 0.0
      %101 = vst [vmem:[#allocation8 + $0x130] sm:$0xff] 0.0
      %102 = vst [vmem:[#allocation8 + $0x138] sm:$0xff] 0.0
      %103 = vst [vmem:[#allocation8 + $0x140] sm:$0xff] 0.0
      %104 = vst [vmem:[#allocation8 + $0x148] sm:$0xff] 0.0
      %105 = vst [vmem:[#allocation8 + $0x150] sm:$0xff] 0.0
      %106 = vst [vmem:[#allocation8 + $0x158] sm:$0xff] 0.0
      %107 = vst [vmem:[#allocation8 + $0x160] sm:$0xff] 0.0
      %108 = vst [vmem:[#allocation8 + $0x168] sm:$0xff] 0.0
      %109 = vst [vmem:[#allocation8 + $0x170] sm:$0xff] 0.0
      %110 = vst [vmem:[#allocation8 + $0x178] sm:$0xff] 0.0
      %111 = vst [vmem:[#allocation8 + $0x180] sm:$0xff] 0.0
      %112 = vst [vmem:[#allocation8 + $0x188] sm:$0xff] 0.0
      %113 = vst [vmem:[#allocation8 + $0x190] sm:$0xff] 0.0
      %114 = vst [vmem:[#allocation8 + $0x198] sm:$0xff] 0.0
      %115 = vst [vmem:[#allocation8 + $0x1a0] sm:$0xff] 0.0
      %116 = vst [vmem:[#allocation8 + $0x1a8] sm:$0xff] 0.0
      %117 = vst [vmem:[#allocation8 + $0x1b0] sm:$0xff] 0.0
      %118 = vst [vmem:[#allocation8 + $0x1b8] sm:$0xff] 0.0
      %119 = vst [vmem:[#allocation8 + $0x1c0] sm:$0xff] 0.0
      %120 = vst [vmem:[#allocation8 + $0x1c8] sm:$0xff] 0.0
      %121 = vst [vmem:[#allocation8 + $0x1d0] sm:$0xff] 0.0
      %122 = vst [vmem:[#allocation8 + $0x1d8] sm:$0xff] 0.0
      %123 = vst [vmem:[#allocation8 + $0x1e0] sm:$0xff] 0.0
      %124 = vst [vmem:[#allocation8 + $0x1e8] sm:$0xff] 0.0
      %125 = vst [vmem:[#allocation8 + $0x1f0] sm:$0xff] 0.0
      %126 = vst [vmem:[#allocation8 + $0x1f8] sm:$0xff] 0.0
    $region33: #{tpu_custom_call.1} parent=1 // pred_fallthru
      _
    %v127 = vld [vmem:[#allocation8] sm:$0xff]
    %v128 = vld [vmem:[#allocation8 + $0x8] sm:$0xff]
    %v129 = vld [vmem:[#allocation8 + $0x10] sm:$0xff]
    %v130 = vld [vmem:[#allocation8 + $0x18] sm:$0xff]
    %v131 = vld [vmem:[#allocation8 + $0x20] sm:$0xff]
    %v132 = vld [vmem:[#allocation8 + $0x28] sm:$0xff]
    %v133 = vld [vmem:[#allocation8 + $0x30] sm:$0xff]
    %v134 = vld [vmem:[#allocation8 + $0x38] sm:$0xff]
    %v135 = vld [vmem:[#allocation8 + $0x40] sm:$0xff]
    %v136 = vld [vmem:[#allocation8 + $0x48] sm:$0xff]
    %v137 = vld [vmem:[#allocation8 + $0x50] sm:$0xff]
    %v138 = vld [vmem:[#allocation8 + $0x58] sm:$0xff]
    %v139 = vld [vmem:[#allocation8 + $0x60] sm:$0xff]
    %v140 = vld [vmem:[#allocation8 + $0x68] sm:$0xff]
    %v141 = vld [vmem:[#allocation8 + $0x70] sm:$0xff]
    %v142 = vld [vmem:[#allocation8 + $0x78] sm:$0xff]
    %v143 = vld [vmem:[#allocation8 + $0x80] sm:$0xff]
    %v144 = vld [vmem:[#allocation8 + $0x88] sm:$0xff]
    %v145 = vld [vmem:[#allocation8 + $0x90] sm:$0xff]
    %v146 = vld [vmem:[#allocation8 + $0x98] sm:$0xff]
    %v147 = vld [vmem:[#allocation8 + $0xa0] sm:$0xff]
    %v148 = vld [vmem:[#allocation8 + $0xa8] sm:$0xff]
    %v149 = vld [vmem:[#allocation8 + $0xb0] sm:$0xff]
    %v150 = vld [vmem:[#allocation8 + $0xb8] sm:$0xff]
    %v151 = vld [vmem:[#allocation8 + $0xc0] sm:$0xff]
    %v152 = vld [vmem:[#allocation8 + $0xc8] sm:$0xff]
    %v153 = vld [vmem:[#allocation8 + $0xd0] sm:$0xff]
    %v154 = vld [vmem:[#allocation8 + $0xd8] sm:$0xff]
    %v155 = vld [vmem:[#allocation8 + $0xe0] sm:$0xff]
    %v156 = vld [vmem:[#allocation8 + $0xe8] sm:$0xff]
    %v157 = vld [vmem:[#allocation8 + $0xf0] sm:$0xff]
    %v158 = vld [vmem:[#allocation8 + $0xf8] sm:$0xff]
    %v159 = vld [vmem:[#allocation8 + $0x100] sm:$0xff]
    %v160 = vld [vmem:[#allocation8 + $0x108] sm:$0xff]
    %v161 = vld [vmem:[#allocation8 + $0x110] sm:$0xff]
    %v162 = vld [vmem:[#allocation8 + $0x118] sm:$0xff]
    %v163 = vld [vmem:[#allocation8 + $0x120] sm:$0xff]
    %v164 = vld [vmem:[#allocation8 + $0x128] sm:$0xff]
    %v165 = vld [vmem:[#allocation8 + $0x130] sm:$0xff]
    %v166 = vld [vmem:[#allocation8 + $0x138] sm:$0xff]
    %v167 = vld [vmem:[#allocation8 + $0x140] sm:$0xff]
    %v168 = vld [vmem:[#allocation8 + $0x148] sm:$0xff]
    %v169 = vld [vmem:[#allocation8 + $0x150] sm:$0xff]
    %v170 = vld [vmem:[#allocation8 + $0x158] sm:$0xff]
    %v171 = vld [vmem:[#allocation8 + $0x160] sm:$0xff]
    %v172 = vld [vmem:[#allocation8 + $0x168] sm:$0xff]
    %v173 = vld [vmem:[#allocation8 + $0x170] sm:$0xff]
    %v174 = vld [vmem:[#allocation8 + $0x178] sm:$0xff]
    %v175 = vld [vmem:[#allocation8 + $0x180] sm:$0xff]
    %v176 = vld [vmem:[#allocation8 + $0x188] sm:$0xff]
    %v177 = vld [vmem:[#allocation8 + $0x190] sm:$0xff]
    %v178 = vld [vmem:[#allocation8 + $0x198] sm:$0xff]
    %v179 = vld [vmem:[#allocation8 + $0x1a0] sm:$0xff]
    %v180 = vld [vmem:[#allocation8 + $0x1a8] sm:$0xff]
    %v181 = vld [vmem:[#allocation8 + $0x1b0] sm:$0xff]
    %v182 = vld [vmem:[#allocation8 + $0x1b8] sm:$0xff]
    %v183 = vld [vmem:[#allocation8 + $0x1c0] sm:$0xff]
    %v184 = vld [vmem:[#allocation8 + $0x1c8] sm:$0xff]
    %v185 = vld [vmem:[#allocation8 + $0x1d0] sm:$0xff]
    %v186 = vld [vmem:[#allocation8 + $0x1d8] sm:$0xff]
    %v187 = vld [vmem:[#allocation8 + $0x1e0] sm:$0xff]
    %v188 = vld [vmem:[#allocation8 + $0x1e8] sm:$0xff]
    %v189 = vld [vmem:[#allocation8 + $0x1f0] sm:$0xff]
    %v190 = vld [vmem:[#allocation8 + $0x1f8] sm:$0xff]
    %v191 = vld [vmem:[#allocation2] sm:$0xff]
    %v192 = vld [vmem:[#allocation2 + $0x8] sm:$0xff]
    %v193 = vld [vmem:[#allocation2 + $0x10] sm:$0xff]
    %v194 = vld [vmem:[#allocation2 + $0x18] sm:$0xff]
    %v195 = vld [vmem:[#allocation2 + $0x20] sm:$0xff]
    %v196 = vld [vmem:[#allocation2 + $0x28] sm:$0xff]
    %v197 = vld [vmem:[#allocation2 + $0x30] sm:$0xff]
    %v198 = vld [vmem:[#allocation2 + $0x38] sm:$0xff]
    %v199 = vld [vmem:[#allocation2 + $0x40] sm:$0xff]
    %v200 = vld [vmem:[#allocation2 + $0x48] sm:$0xff]
    %v201 = vld [vmem:[#allocation2 + $0x50] sm:$0xff]
    %v202 = vld [vmem:[#allocation2 + $0x58] sm:$0xff]
    %v203 = vld [vmem:[#allocation2 + $0x60] sm:$0xff]
    %v204 = vld [vmem:[#allocation2 + $0x68] sm:$0xff]
    %v205 = vld [vmem:[#allocation2 + $0x70] sm:$0xff]
    %v206 = vld [vmem:[#allocation2 + $0x78] sm:$0xff]
    %v207 = vld [vmem:[#allocation2 + $0x80] sm:$0xff]
    %v208 = vld [vmem:[#allocation2 + $0x88] sm:$0xff]
    %v209 = vld [vmem:[#allocation2 + $0x90] sm:$0xff]
    %v210 = vld [vmem:[#allocation2 + $0x98] sm:$0xff]
    %v211 = vld [vmem:[#allocation2 + $0xa0] sm:$0xff]
    %v212 = vld [vmem:[#allocation2 + $0xa8] sm:$0xff]
    %v213 = vld [vmem:[#allocation2 + $0xb0] sm:$0xff]
    %v214 = vld [vmem:[#allocation2 + $0xb8] sm:$0xff]
    %v215 = vld [vmem:[#allocation2 + $0xc0] sm:$0xff]
    %v216 = vld [vmem:[#allocation2 + $0xc8] sm:$0xff]
    %v217 = vld [vmem:[#allocation2 + $0xd0] sm:$0xff]
    %v218 = vld [vmem:[#allocation2 + $0xd8] sm:$0xff]
    %v219 = vld [vmem:[#allocation2 + $0xe0] sm:$0xff]
    %v220 = vld [vmem:[#allocation2 + $0xe8] sm:$0xff]
    %v221 = vld [vmem:[#allocation2 + $0xf0] sm:$0xff]
    %v222 = vld [vmem:[#allocation2 + $0xf8] sm:$0xff]
    %v223 = vld [vmem:[#allocation2 + $0x100] sm:$0xff]
    %v224 = vld [vmem:[#allocation2 + $0x108] sm:$0xff]
    %v225 = vld [vmem:[#allocation2 + $0x110] sm:$0xff]
    %v226 = vld [vmem:[#allocation2 + $0x118] sm:$0xff]
    %v227 = vld [vmem:[#allocation2 + $0x120] sm:$0xff]
    %v228 = vld [vmem:[#allocation2 + $0x128] sm:$0xff]
    %v229 = vld [vmem:[#allocation2 + $0x130] sm:$0xff]
    %v230 = vld [vmem:[#allocation2 + $0x138] sm:$0xff]
    %v231 = vld [vmem:[#allocation2 + $0x140] sm:$0xff]
    %v232 = vld [vmem:[#allocation2 + $0x148] sm:$0xff]
    %v233 = vld [vmem:[#allocation2 + $0x150] sm:$0xff]
    %v234 = vld [vmem:[#allocation2 + $0x158] sm:$0xff]
    %v235 = vld [vmem:[#allocation2 + $0x160] sm:$0xff]
    %v236 = vld [vmem:[#allocation2 + $0x168] sm:$0xff]
    %v237 = vld [vmem:[#allocation2 + $0x170] sm:$0xff]
    %v238 = vld [vmem:[#allocation2 + $0x178] sm:$0xff]
    %v239 = vld [vmem:[#allocation2 + $0x180] sm:$0xff]
    %v240 = vld [vmem:[#allocation2 + $0x188] sm:$0xff]
    %v241 = vld [vmem:[#allocation2 + $0x190] sm:$0xff]
    %v242 = vld [vmem:[#allocation2 + $0x198] sm:$0xff]
    %v243 = vld [vmem:[#allocation2 + $0x1a0] sm:$0xff]
    %v244 = vld [vmem:[#allocation2 + $0x1a8] sm:$0xff]
    %v245 = vld [vmem:[#allocation2 + $0x1b0] sm:$0xff]
    %v246 = vld [vmem:[#allocation2 + $0x1b8] sm:$0xff]
    %v247 = vld [vmem:[#allocation2 + $0x1c0] sm:$0xff]
    %v248 = vld [vmem:[#allocation2 + $0x1c8] sm:$0xff]
    %v249 = vld [vmem:[#allocation2 + $0x1d0] sm:$0xff]
    %v250 = vld [vmem:[#allocation2 + $0x1d8] sm:$0xff]
    %v251 = vld [vmem:[#allocation2 + $0x1e0] sm:$0xff]
    %v252 = vld [vmem:[#allocation2 + $0x1e8] sm:$0xff]
    %v253 = vld [vmem:[#allocation2 + $0x1f0] sm:$0xff]
    %v254 = vld [vmem:[#allocation2 + $0x1f8] sm:$0xff]
    %v255 = vld [vmem:[#allocation2 + $0x200] sm:$0xff]
    %v256 = vld [vmem:[#allocation2 + $0x208] sm:$0xff]
    %v257 = vld [vmem:[#allocation2 + $0x210] sm:$0xff]
    %v258 = vld [vmem:[#allocation2 + $0x218] sm:$0xff]
    %v259 = vld [vmem:[#allocation2 + $0x220] sm:$0xff]
    %v260 = vld [vmem:[#allocation2 + $0x228] sm:$0xff]
    %v261 = vld [vmem:[#allocation2 + $0x230] sm:$0xff]
    %v262 = vld [vmem:[#allocation2 + $0x238] sm:$0xff]
    %v263 = vld [vmem:[#allocation2 + $0x240] sm:$0xff]
    %v264 = vld [vmem:[#allocation2 + $0x248] sm:$0xff]
    %v265 = vld [vmem:[#allocation2 + $0x250] sm:$0xff]
    %v266 = vld [vmem:[#allocation2 + $0x258] sm:$0xff]
    %v267 = vld [vmem:[#allocation2 + $0x260] sm:$0xff]
    %v268 = vld [vmem:[#allocation2 + $0x268] sm:$0xff]
    %v269 = vld [vmem:[#allocation2 + $0x270] sm:$0xff]
    %v270 = vld [vmem:[#allocation2 + $0x278] sm:$0xff]
    %v271 = vld [vmem:[#allocation2 + $0x280] sm:$0xff]
    %v272 = vld [vmem:[#allocation2 + $0x288] sm:$0xff]
    %v273 = vld [vmem:[#allocation2 + $0x290] sm:$0xff]
    %v274 = vld [vmem:[#allocation2 + $0x298] sm:$0xff]
    %v275 = vld [vmem:[#allocation2 + $0x2a0] sm:$0xff]
    %v276 = vld [vmem:[#allocation2 + $0x2a8] sm:$0xff]
    %v277 = vld [vmem:[#allocation2 + $0x2b0] sm:$0xff]
    %v278 = vld [vmem:[#allocation2 + $0x2b8] sm:$0xff]
    %v279 = vld [vmem:[#allocation2 + $0x2c0] sm:$0xff]
    %v280 = vld [vmem:[#allocation2 + $0x2c8] sm:$0xff]
    %v281 = vld [vmem:[#allocation2 + $0x2d0] sm:$0xff]
    %v282 = vld [vmem:[#allocation2 + $0x2d8] sm:$0xff]
    %v283 = vld [vmem:[#allocation2 + $0x2e0] sm:$0xff]
    %v284 = vld [vmem:[#allocation2 + $0x2e8] sm:$0xff]
    %v285 = vld [vmem:[#allocation2 + $0x2f0] sm:$0xff]
    %v286 = vld [vmem:[#allocation2 + $0x2f8] sm:$0xff]
    %v287 = vld [vmem:[#allocation2 + $0x300] sm:$0xff]
    %v288 = vld [vmem:[#allocation2 + $0x308] sm:$0xff]
    %v289 = vld [vmem:[#allocation2 + $0x310] sm:$0xff]
    %v290 = vld [vmem:[#allocation2 + $0x318] sm:$0xff]
    %v291 = vld [vmem:[#allocation2 + $0x320] sm:$0xff]
    %v292 = vld [vmem:[#allocation2 + $0x328] sm:$0xff]
    %v293 = vld [vmem:[#allocation2 + $0x330] sm:$0xff]
    %v294 = vld [vmem:[#allocation2 + $0x338] sm:$0xff]
    %v295 = vld [vmem:[#allocation2 + $0x340] sm:$0xff]
    %v296 = vld [vmem:[#allocation2 + $0x348] sm:$0xff]
    %v297 = vld [vmem:[#allocation2 + $0x350] sm:$0xff]
    %v298 = vld [vmem:[#allocation2 + $0x358] sm:$0xff]
    %v299 = vld [vmem:[#allocation2 + $0x360] sm:$0xff]
    %v300 = vld [vmem:[#allocation2 + $0x368] sm:$0xff]
    %v301 = vld [vmem:[#allocation2 + $0x370] sm:$0xff]
    %v302 = vld [vmem:[#allocation2 + $0x378] sm:$0xff]
    %v303 = vld [vmem:[#allocation2 + $0x380] sm:$0xff]
    %v304 = vld [vmem:[#allocation2 + $0x388] sm:$0xff]
    %v305 = vld [vmem:[#allocation2 + $0x390] sm:$0xff]
    %v306 = vld [vmem:[#allocation2 + $0x398] sm:$0xff]
    %v307 = vld [vmem:[#allocation2 + $0x3a0] sm:$0xff]
    %v308 = vld [vmem:[#allocation2 + $0x3a8] sm:$0xff]
    %v309 = vld [vmem:[#allocation2 + $0x3b0] sm:$0xff]
    %v310 = vld [vmem:[#allocation2 + $0x3b8] sm:$0xff]
    %v311 = vld [vmem:[#allocation2 + $0x3c0] sm:$0xff]
    %v312 = vld [vmem:[#allocation2 + $0x3c8] sm:$0xff]
    %v313 = vld [vmem:[#allocation2 + $0x3d0] sm:$0xff]
    %v314 = vld [vmem:[#allocation2 + $0x3d8] sm:$0xff]
    %v315 = vld [vmem:[#allocation2 + $0x3e0] sm:$0xff]
    %v316 = vld [vmem:[#allocation2 + $0x3e8] sm:$0xff]
    %v317 = vld [vmem:[#allocation2 + $0x3f0] sm:$0xff]
    %v318 = vld [vmem:[#allocation2 + $0x3f8] sm:$0xff]
    %v319 = vld [vmem:[#allocation5] sm:$0xff]
    %v320 = vld [vmem:[#allocation5 + $0x8] sm:$0xff]
    %v321 = vld [vmem:[#allocation5 + $0x10] sm:$0xff]
    %v322 = vld [vmem:[#allocation5 + $0x18] sm:$0xff]
    %v323 = vld [vmem:[#allocation5 + $0x20] sm:$0xff]
    %v324 = vld [vmem:[#allocation5 + $0x28] sm:$0xff]
    %v325 = vld [vmem:[#allocation5 + $0x30] sm:$0xff]
    %v326 = vld [vmem:[#allocation5 + $0x38] sm:$0xff]
    %v327 = vld [vmem:[#allocation5 + $0x40] sm:$0xff]
    %v328 = vld [vmem:[#allocation5 + $0x48] sm:$0xff]
    %v329 = vld [vmem:[#allocation5 + $0x50] sm:$0xff]
    %v330 = vld [vmem:[#allocation5 + $0x58] sm:$0xff]
    %v331 = vld [vmem:[#allocation5 + $0x60] sm:$0xff]
    %v332 = vld [vmem:[#allocation5 + $0x68] sm:$0xff]
    %v333 = vld [vmem:[#allocation5 + $0x70] sm:$0xff]
    %v334 = vld [vmem:[#allocation5 + $0x78] sm:$0xff]
    %v335 = vld [vmem:[#allocation5 + $0x80] sm:$0xff]
    %v336 = vld [vmem:[#allocation5 + $0x88] sm:$0xff]
    %v337 = vld [vmem:[#allocation5 + $0x90] sm:$0xff]
    %v338 = vld [vmem:[#allocation5 + $0x98] sm:$0xff]
    %v339 = vld [vmem:[#allocation5 + $0xa0] sm:$0xff]
    %v340 = vld [vmem:[#allocation5 + $0xa8] sm:$0xff]
    %v341 = vld [vmem:[#allocation5 + $0xb0] sm:$0xff]
    %v342 = vld [vmem:[#allocation5 + $0xb8] sm:$0xff]
    %v343 = vld [vmem:[#allocation5 + $0xc0] sm:$0xff]
    %v344 = vld [vmem:[#allocation5 + $0xc8] sm:$0xff]
    %v345 = vld [vmem:[#allocation5 + $0xd0] sm:$0xff]
    %v346 = vld [vmem:[#allocation5 + $0xd8] sm:$0xff]
    %v347 = vld [vmem:[#allocation5 + $0xe0] sm:$0xff]
    %v348 = vld [vmem:[#allocation5 + $0xe8] sm:$0xff]
    %v349 = vld [vmem:[#allocation5 + $0xf0] sm:$0xff]
    %v350 = vld [vmem:[#allocation5 + $0xf8] sm:$0xff]
    %v351 = vld [vmem:[#allocation5 + $0x100] sm:$0xff]
    %v352 = vld [vmem:[#allocation5 + $0x108] sm:$0xff]
    %v353 = vld [vmem:[#allocation5 + $0x110] sm:$0xff]
    %v354 = vld [vmem:[#allocation5 + $0x118] sm:$0xff]
    %v355 = vld [vmem:[#allocation5 + $0x120] sm:$0xff]
    %v356 = vld [vmem:[#allocation5 + $0x128] sm:$0xff]
    %v357 = vld [vmem:[#allocation5 + $0x130] sm:$0xff]
    %v358 = vld [vmem:[#allocation5 + $0x138] sm:$0xff]
    %v359 = vld [vmem:[#allocation5 + $0x140] sm:$0xff]
    %v360 = vld [vmem:[#allocation5 + $0x148] sm:$0xff]
    %v361 = vld [vmem:[#allocation5 + $0x150] sm:$0xff]
    %v362 = vld [vmem:[#allocation5 + $0x158] sm:$0xff]
    %v363 = vld [vmem:[#allocation5 + $0x160] sm:$0xff]
    %v364 = vld [vmem:[#allocation5 + $0x168] sm:$0xff]
    %v365 = vld [vmem:[#allocation5 + $0x170] sm:$0xff]
    %v366 = vld [vmem:[#allocation5 + $0x178] sm:$0xff]
    %v367 = vld [vmem:[#allocation5 + $0x180] sm:$0xff]
    %v368 = vld [vmem:[#allocation5 + $0x188] sm:$0xff]
    %v369 = vld [vmem:[#allocation5 + $0x190] sm:$0xff]
    %v370 = vld [vmem:[#allocation5 + $0x198] sm:$0xff]
    %v371 = vld [vmem:[#allocation5 + $0x1a0] sm:$0xff]
    %v372 = vld [vmem:[#allocation5 + $0x1a8] sm:$0xff]
    %v373 = vld [vmem:[#allocation5 + $0x1b0] sm:$0xff]
    %v374 = vld [vmem:[#allocation5 + $0x1b8] sm:$0xff]
    %v375 = vld [vmem:[#allocation5 + $0x1c0] sm:$0xff]
    %v376 = vld [vmem:[#allocation5 + $0x1c8] sm:$0xff]
    %v377 = vld [vmem:[#allocation5 + $0x1d0] sm:$0xff]
    %v378 = vld [vmem:[#allocation5 + $0x1d8] sm:$0xff]
    %v379 = vld [vmem:[#allocation5 + $0x1e0] sm:$0xff]
    %v380 = vld [vmem:[#allocation5 + $0x1e8] sm:$0xff]
    %v381 = vld [vmem:[#allocation5 + $0x1f0] sm:$0xff]
    %v382 = vld [vmem:[#allocation5 + $0x1f8] sm:$0xff]
    %v383 = vld [vmem:[#allocation5 + $0x200] sm:$0xff]
    %v384 = vld [vmem:[#allocation5 + $0x208] sm:$0xff]
    %v385 = vld [vmem:[#allocation5 + $0x210] sm:$0xff]
    %v386 = vld [vmem:[#allocation5 + $0x218] sm:$0xff]
    %v387 = vld [vmem:[#allocation5 + $0x220] sm:$0xff]
    %v388 = vld [vmem:[#allocation5 + $0x228] sm:$0xff]
    %v389 = vld [vmem:[#allocation5 + $0x230] sm:$0xff]
    %v390 = vld [vmem:[#allocation5 + $0x238] sm:$0xff]
    %v391 = vld [vmem:[#allocation5 + $0x240] sm:$0xff]
    %v392 = vld [vmem:[#allocation5 + $0x248] sm:$0xff]
    %v393 = vld [vmem:[#allocation5 + $0x250] sm:$0xff]
    %v394 = vld [vmem:[#allocation5 + $0x258] sm:$0xff]
    %v395 = vld [vmem:[#allocation5 + $0x260] sm:$0xff]
    %v396 = vld [vmem:[#allocation5 + $0x268] sm:$0xff]
    %v397 = vld [vmem:[#allocation5 + $0x270] sm:$0xff]
    %v398 = vld [vmem:[#allocation5 + $0x278] sm:$0xff]
    %v399 = vld [vmem:[#allocation5 + $0x280] sm:$0xff]
    %v400 = vld [vmem:[#allocation5 + $0x288] sm:$0xff]
    %v401 = vld [vmem:[#allocation5 + $0x290] sm:$0xff]
    %v402 = vld [vmem:[#allocation5 + $0x298] sm:$0xff]
    %v403 = vld [vmem:[#allocation5 + $0x2a0] sm:$0xff]
    %v404 = vld [vmem:[#allocation5 + $0x2a8] sm:$0xff]
    %v405 = vld [vmem:[#allocation5 + $0x2b0] sm:$0xff]
    %v406 = vld [vmem:[#allocation5 + $0x2b8] sm:$0xff]
    %v407 = vld [vmem:[#allocation5 + $0x2c0] sm:$0xff]
    %v408 = vld [vmem:[#allocation5 + $0x2c8] sm:$0xff]
    %v409 = vld [vmem:[#allocation5 + $0x2d0] sm:$0xff]
    %v410 = vld [vmem:[#allocation5 + $0x2d8] sm:$0xff]
    %v411 = vld [vmem:[#allocation5 + $0x2e0] sm:$0xff]
    %v412 = vld [vmem:[#allocation5 + $0x2e8] sm:$0xff]
    %v413 = vld [vmem:[#allocation5 + $0x2f0] sm:$0xff]
    %v414 = vld [vmem:[#allocation5 + $0x2f8] sm:$0xff]
    %v415 = vld [vmem:[#allocation5 + $0x300] sm:$0xff]
    %v416 = vld [vmem:[#allocation5 + $0x308] sm:$0xff]
    %v417 = vld [vmem:[#allocation5 + $0x310] sm:$0xff]
    %v418 = vld [vmem:[#allocation5 + $0x318] sm:$0xff]
    %v419 = vld [vmem:[#allocation5 + $0x320] sm:$0xff]
    %v420 = vld [vmem:[#allocation5 + $0x328] sm:$0xff]
    %v421 = vld [vmem:[#allocation5 + $0x330] sm:$0xff]
    %v422 = vld [vmem:[#allocation5 + $0x338] sm:$0xff]
    %v423 = vld [vmem:[#allocation5 + $0x340] sm:$0xff]
    %v424 = vld [vmem:[#allocation5 + $0x348] sm:$0xff]
    %v425 = vld [vmem:[#allocation5 + $0x350] sm:$0xff]
    %v426 = vld [vmem:[#allocation5 + $0x358] sm:$0xff]
    %v427 = vld [vmem:[#allocation5 + $0x360] sm:$0xff]
    %v428 = vld [vmem:[#allocation5 + $0x368] sm:$0xff]
    %v429 = vld [vmem:[#allocation5 + $0x370] sm:$0xff]
    %v430 = vld [vmem:[#allocation5 + $0x378] sm:$0xff]
    %v431 = vld [vmem:[#allocation5 + $0x380] sm:$0xff]
    %v432 = vld [vmem:[#allocation5 + $0x388] sm:$0xff]
    %v433 = vld [vmem:[#allocation5 + $0x390] sm:$0xff]
    %v434 = vld [vmem:[#allocation5 + $0x398] sm:$0xff]
    %v435 = vld [vmem:[#allocation5 + $0x3a0] sm:$0xff]
    %v436 = vld [vmem:[#allocation5 + $0x3a8] sm:$0xff]
    %v437 = vld [vmem:[#allocation5 + $0x3b0] sm:$0xff]
    %v438 = vld [vmem:[#allocation5 + $0x3b8] sm:$0xff]
    %v439 = vld [vmem:[#allocation5 + $0x3c0] sm:$0xff]
    %v440 = vld [vmem:[#allocation5 + $0x3c8] sm:$0xff]
    %v441 = vld [vmem:[#allocation5 + $0x3d0] sm:$0xff]
    %v442 = vld [vmem:[#allocation5 + $0x3d8] sm:$0xff]
    %v443 = vld [vmem:[#allocation5 + $0x3e0] sm:$0xff]
    %v444 = vld [vmem:[#allocation5 + $0x3e8] sm:$0xff]
    %v445 = vld [vmem:[#allocation5 + $0x3f0] sm:$0xff]
    %v446 = vld [vmem:[#allocation5 + $0x3f8] sm:$0xff]
    %447 = vmatprep.subr.mxu0 %v320
    %448 = vmatpush1.msra.mxu0 %v319
    %449 = vmatprep.subr.mxu0 %v322
    %450 = vmatpush1.msra.mxu0 %v321
    %451 = vmatprep.subr.mxu0 %v324
    %452 = vmatpush1.msra.mxu0 %v323
    %453 = vmatprep.subr.mxu0 %v326
    %454 = vmatpush1.msra.mxu0 %v325
    %455 = vmatprep.subr.mxu0 %v328
    %456 = vmatpush1.msra.mxu0 %v327
    %457 = vmatprep.subr.mxu0 %v330
    %458 = vmatpush1.msra.mxu0 %v329
    %459 = vmatprep.subr.mxu0 %v332
    %460 = vmatpush1.msra.mxu0 %v331
    %461 = vmatprep.subr.mxu0 %v334
    %462 = vmatpush1.msra.mxu0 %v333
    %463 = vmatprep.subr.mxu0 %v336
    %464 = vmatpush1.msra.mxu0 %v335
    %465 = vmatprep.subr.mxu0 %v338
    %466 = vmatpush1.msra.mxu0 %v337
    %467 = vmatprep.subr.mxu0 %v340
    %468 = vmatpush1.msra.mxu0 %v339
    %469 = vmatprep.subr.mxu0 %v342
    %470 = vmatpush1.msra.mxu0 %v341
    %471 = vmatprep.subr.mxu0 %v344
    %472 = vmatpush1.msra.mxu0 %v343
    %473 = vmatprep.subr.mxu0 %v346
    %474 = vmatpush1.msra.mxu0 %v345
    %475 = vmatprep.subr.mxu0 %v348
    %476 = vmatpush1.msra.mxu0 %v347
    %477 = vmatprep.subr.mxu0 %v350
    %478 = vmatpush1.msra.mxu0 %v349
    %479 = vmatprep.subr.mxu0 %v352
    %480 = vmatpush1.msra.mxu0 %v351
    %481 = vmatprep.subr.mxu0 %v354
    %482 = vmatpush1.msra.mxu0 %v353
    %483 = vmatprep.subr.mxu0 %v356
    %484 = vmatpush1.msra.mxu0 %v355
    %485 = vmatprep.subr.mxu0 %v358
    %486 = vmatpush1.msra.mxu0 %v357
    %487 = vmatprep.subr.mxu0 %v360
    %488 = vmatpush1.msra.mxu0 %v359
    %489 = vmatprep.subr.mxu0 %v362
    %490 = vmatpush1.msra.mxu0 %v361
    %491 = vmatprep.subr.mxu0 %v364
    %492 = vmatpush1.msra.mxu0 %v363
    %493 = vmatprep.subr.mxu0 %v366
    %494 = vmatpush1.msra.mxu0 %v365
    %495 = vmatprep.subr.mxu0 %v368
    %496 = vmatpush1.msra.mxu0 %v367
    %497 = vmatprep.subr.mxu0 %v370
    %498 = vmatpush1.msra.mxu0 %v369
    %499 = vmatprep.subr.mxu0 %v372
    %500 = vmatpush1.msra.mxu0 %v371
    %501 = vmatprep.subr.mxu0 %v374
    %502 = vmatpush1.msra.mxu0 %v373
    %503 = vmatprep.subr.mxu0 %v376
    %504 = vmatpush1.msra.mxu0 %v375
    %505 = vmatprep.subr.mxu0 %v378
    %506 = vmatpush1.msra.mxu0 %v377
    %507 = vmatprep.subr.mxu0 %v380
    %508 = vmatpush1.msra.mxu0 %v379
    %509 = vmatprep.subr.mxu0 %v382
    %510 = vmatpush1.msra.mxu0 %v381
    %511 = vmatprep.mubr.f32.mxu0 %v192
    %512 = vmatmul.mubr.f32.gmra.mrb[0].mxu0 %v191
    %v513 = vpop.f32.mrb[0].mxu0
    %v514 = vadd.f32 0.0, %v513
    %v515 = vpop.f32.mrb[0].mxu0
    %v516 = vadd.f32 0.0, %v515
    %517 = vmatprep.mubr.f32.mxu0 %v196
    %518 = vmatmul.mubr.f32.gmra.mrb[0].mxu0 %v195
    %v519 = vpop.f32.mrb[0].mxu0
    %v520 = vadd.f32 0.0, %v519
    %v521 = vpop.f32.mrb[0].mxu0
    %v522 = vadd.f32 0.0, %v521
    %523 = vmatprep.mubr.f32.mxu0 %v200
    %524 = vmatmul.mubr.f32.gmra.mrb[0].mxu0 %v199
    %v525 = vpop.f32.mrb[0].mxu0
    %v526 = vadd.f32 0.0, %v525
    %v527 = vpop.f32.mrb[0].mxu0
    %v528 = vadd.f32 0.0, %v527
    %529 = vmatprep.mubr.f32.mxu0 %v204
    %530 = vmatmul.mubr.f32.gmra.mrb[0].mxu0 %v203
    %v531 = vpop.f32.mrb[0].mxu0
    %v532 = vadd.f32 0.0, %v531
    %v533 = vpop.f32.mrb[0].mxu0
    %v534 = vadd.f32 0.0, %v533
    %535 = vmatprep.mubr.f32.mxu0 %v208
    %536 = vmatmul.mubr.f32.gmra.mrb[0].mxu0 %v207
    %v537 = vpop.f32.mrb[0].mxu0
    %v538 = vadd.f32 0.0, %v537
    %v539 = vpop.f32.mrb[0].mxu0
    %v540 = vadd.f32 0.0, %v539
    %541 = vmatprep.mubr.f32.mxu0 %v212
    %542 = vmatmul.mubr.f32.gmra.mrb[0].mxu0 %v211
    %v543 = vpop.f32.mrb[0].mxu0
    %v544 = vadd.f32 0.0, %v543
    %v545 = vpop.f32.mrb[0].mxu0
    %v546 = vadd.f32 0.0, %v545
    %547 = vmatprep.mubr.f32.mxu0 %v216
    %548 = vmatmul.mubr.f32.gmra.mrb[0].mxu0 %v215
    %v549 = vpop.f32.mrb[0].mxu0
    %v550 = vadd.f32 0.0, %v549
    %v551 = vpop.f32.mrb[0].mxu0
    %v552 = vadd.f32 0.0, %v551
    %553 = vmatprep.mubr.f32.mxu0 %v220
    %554 = vmatmul.mubr.f32.gmra.mrb[0].mxu0 %v219
    %v555 = vpop.f32.mrb[0].mxu0
    %v556 = vadd.f32 0.0, %v555
    %v557 = vpop.f32.mrb[0].mxu0
    %v558 = vadd.f32 0.0, %v557
    %559 = vmatprep.mubr.f32.mxu0 %v224
    %560 = vmatmul.mubr.f32.gmra.mrb[0].mxu0 %v223
    %v561 = vpop.f32.mrb[0].mxu0
    %v562 = vadd.f32 0.0, %v561
    %v563 = vpop.f32.mrb[0].mxu0
    %v564 = vadd.f32 0.0, %v563
    %565 = vmatprep.mubr.f32.mxu0 %v228
    %566 = vmatmul.mubr.f32.gmra.mrb[0].mxu0 %v227
    %v567 = vpop.f32.mrb[0].mxu0
    %v568 = vadd.f32 0.0, %v567
    %v569 = vpop.f32.mrb[0].mxu0
    %v570 = vadd.f32 0.0, %v569
    %571 = vmatprep.mubr.f32.mxu0 %v232
    %572 = vmatmul.mubr.f32.gmra.mrb[0].mxu0 %v231
    %v573 = vpop.f32.mrb[0].mxu0
    %v574 = vadd.f32 0.0, %v573
    %v575 = vpop.f32.mrb[0].mxu0
    %v576 = vadd.f32 0.0, %v575
    %577 = vmatprep.mubr.f32.mxu0 %v236
    %578 = vmatmul.mubr.f32.gmra.mrb[0].mxu0 %v235
    %v579 = vpop.f32.mrb[0].mxu0
    %v580 = vadd.f32 0.0, %v579
    %v581 = vpop.f32.mrb[0].mxu0
    %v582 = vadd.f32 0.0, %v581
    %583 = vmatprep.mubr.f32.mxu0 %v240
    %584 = vmatmul.mubr.f32.gmra.mrb[0].mxu0 %v239
    %v585 = vpop.f32.mrb[0].mxu0
    %v586 = vadd.f32 0.0, %v585
    %v587 = vpop.f32.mrb[0].mxu0
    %v588 = vadd.f32 0.0, %v587
    %589 = vmatprep.mubr.f32.mxu0 %v244
    %590 = vmatmul.mubr.f32.gmra.mrb[0].mxu0 %v243
    %v591 = vpop.f32.mrb[0].mxu0
    %v592 = vadd.f32 0.0, %v591
    %v593 = vpop.f32.mrb[0].mxu0
    %v594 = vadd.f32 0.0, %v593
    %595 = vmatprep.mubr.f32.mxu0 %v248
    %596 = vmatmul.mubr.f32.gmra.mrb[0].mxu0 %v247
    %v597 = vpop.f32.mrb[0].mxu0
    %v598 = vadd.f32 0.0, %v597
    %v599 = vpop.f32.mrb[0].mxu0
    %v600 = vadd.f32 0.0, %v599
    %601 = vmatprep.mubr.f32.mxu0 %v252
    %602 = vmatmul.mubr.f32.gmra.mrb[0].mxu0 %v251
    %v603 = vpop.f32.mrb[0].mxu0
    %v604 = vadd.f32 0.0, %v603
    %v605 = vpop.f32.mrb[0].mxu0
    %v606 = vadd.f32 0.0, %v605
    %607 = vmatprep.mubr.f32.mxu0 %v256
    %608 = vmatmul.mubr.f32.gmra.mrb[0].mxu0 %v255
    %v609 = vpop.f32.mrb[0].mxu0
    %v610 = vadd.f32 0.0, %v609
    %v611 = vpop.f32.mrb[0].mxu0
    %v612 = vadd.f32 0.0, %v611
    %613 = vmatprep.mubr.f32.mxu0 %v260
    %614 = vmatmul.mubr.f32.gmra.mrb[0].mxu0 %v259
    %v615 = vpop.f32.mrb[0].mxu0
    %v616 = vadd.f32 0.0, %v615
    %v617 = vpop.f32.mrb[0].mxu0
    %v618 = vadd.f32 0.0, %v617
    %619 = vmatprep.mubr.f32.mxu0 %v264
    %620 = vmatmul.mubr.f32.gmra.mrb[0].mxu0 %v263
    %v621 = vpop.f32.mrb[0].mxu0
    %v622 = vadd.f32 0.0, %v621
    %v623 = vpop.f32.mrb[0].mxu0
    %v624 = vadd.f32 0.0, %v623
    %625 = vmatprep.mubr.f32.mxu0 %v268
    %626 = vmatmul.mubr.f32.gmra.mrb[0].mxu0 %v267
    %v627 = vpop.f32.mrb[0].mxu0
    %v628 = vadd.f32 0.0, %v627
    %v629 = vpop.f32.mrb[0].mxu0
    %v630 = vadd.f32 0.0, %v629
    %631 = vmatprep.mubr.f32.mxu0 %v272
    %632 = vmatmul.mubr.f32.gmra.mrb[0].mxu0 %v271
    %v633 = vpop.f32.mrb[0].mxu0
    %v634 = vadd.f32 0.0, %v633
    %v635 = vpop.f32.mrb[0].mxu0
    %v636 = vadd.f32 0.0, %v635
    %637 = vmatprep.mubr.f32.mxu0 %v276
    %638 = vmatmul.mubr.f32.gmra.mrb[0].mxu0 %v275
    %v639 = vpop.f32.mrb[0].mxu0
    %v640 = vadd.f32 0.0, %v639
    %v641 = vpop.f32.mrb[0].mxu0
    %v642 = vadd.f32 0.0, %v641
    %643 = vmatprep.mubr.f32.mxu0 %v280
    %644 = vmatmul.mubr.f32.gmra.mrb[0].mxu0 %v279
    %v645 = vpop.f32.mrb[0].mxu0
    %v646 = vadd.f32 0.0, %v645
    %v647 = vpop.f32.mrb[0].mxu0
    %v648 = vadd.f32 0.0, %v647
    %649 = vmatprep.mubr.f32.mxu0 %v284
    %650 = vmatmul.mubr.f32.gmra.mrb[0].mxu0 %v283
    %v651 = vpop.f32.mrb[0].mxu0
    %v652 = vadd.f32 0.0, %v651
    %v653 = vpop.f32.mrb[0].mxu0
    %v654 = vadd.f32 0.0, %v653
    %655 = vmatprep.mubr.f32.mxu0 %v288
    %656 = vmatmul.mubr.f32.gmra.mrb[0].mxu0 %v287
    %v657 = vpop.f32.mrb[0].mxu0
    %v658 = vadd.f32 0.0, %v657
    %v659 = vpop.f32.mrb[0].mxu0
    %v660 = vadd.f32 0.0, %v659
    %661 = vmatprep.mubr.f32.mxu0 %v292
    %662 = vmatmul.mubr.f32.gmra.mrb[0].mxu0 %v291
    %v663 = vpop.f32.mrb[0].mxu0
    %v664 = vadd.f32 0.0, %v663
    %v665 = vpop.f32.mrb[0].mxu0
    %v666 = vadd.f32 0.0, %v665
    %667 = vmatprep.mubr.f32.mxu0 %v296
    %668 = vmatmul.mubr.f32.gmra.mrb[0].mxu0 %v295
    %v669 = vpop.f32.mrb[0].mxu0
    %v670 = vadd.f32 0.0, %v669
    %v671 = vpop.f32.mrb[0].mxu0
    %v672 = vadd.f32 0.0, %v671
    %673 = vmatprep.mubr.f32.mxu0 %v300
    %674 = vmatmul.mubr.f32.gmra.mrb[0].mxu0 %v299
    %v675 = vpop.f32.mrb[0].mxu0
    %v676 = vadd.f32 0.0, %v675
    %v677 = vpop.f32.mrb[0].mxu0
    %v678 = vadd.f32 0.0, %v677
    %679 = vmatprep.mubr.f32.mxu0 %v304
    %680 = vmatmul.mubr.f32.gmra.mrb[0].mxu0 %v303
    %v681 = vpop.f32.mrb[0].mxu0
    %v682 = vadd.f32 0.0, %v681
    %v683 = vpop.f32.mrb[0].mxu0
    %v684 = vadd.f32 0.0, %v683
    %685 = vmatprep.mubr.f32.mxu0 %v308
    %686 = vmatmul.mubr.f32.gmra.mrb[0].mxu0 %v307
    %v687 = vpop.f32.mrb[0].mxu0
    %v688 = vadd.f32 0.0, %v687
    %v689 = vpop.f32.mrb[0].mxu0
    %v690 = vadd.f32 0.0, %v689
    %691 = vmatprep.mubr.f32.mxu0 %v312
    %692 = vmatmul.mubr.f32.gmra.mrb[0].mxu0 %v311
    %v693 = vpop.f32.mrb[0].mxu0
    %v694 = vadd.f32 0.0, %v693
    %v695 = vpop.f32.mrb[0].mxu0
    %v696 = vadd.f32 0.0, %v695
    %697 = vmatprep.mubr.f32.mxu0 %v316
    %698 = vmatmul.mubr.f32.gmra.mrb[0].mxu0 %v315
    %v699 = vpop.f32.mrb[0].mxu0
    %v700 = vadd.f32 0.0, %v699
    %v701 = vpop.f32.mrb[0].mxu0
    %v702 = vadd.f32 0.0, %v701
    %703 = vdwg.mxu0
    %704 = vmatprep.subr.mxu0 %v384
    %705 = vmatpush1.msra.mxu0 %v383
    %706 = vmatprep.subr.mxu0 %v386
    %707 = vmatpush1.msra.mxu0 %v385
    %708 = vmatprep.subr.mxu0 %v388
    %709 = vmatpush1.msra.mxu0 %v387
    %710 = vmatprep.subr.mxu0 %v390
    %711 = vmatpush1.msra.mxu0 %v389
    %712 = vmatprep.subr.mxu0 %v392
    %713 = vmatpush1.msra.mxu0 %v391
    %714 = vmatprep.subr.mxu0 %v394
    %715 = vmatpush1.msra.mxu0 %v393
    %716 = vmatprep.subr.mxu0 %v396
    %717 = vmatpush1.msra.mxu0 %v395
    %718 = vmatprep.subr.mxu0 %v398
    %719 = vmatpush1.msra.mxu0 %v397
    %720 = vmatprep.subr.mxu0 %v400
    %721 = vmatpush1.msra.mxu0 %v399
    %722 = vmatprep.subr.mxu0 %v402
    %723 = vmatpush1.msra.mxu0 %v401
    %724 = vmatprep.subr.mxu0 %v404
    %725 = vmatpush1.msra.mxu0 %v403
    %726 = vmatprep.subr.mxu0 %v406
    %727 = vmatpush1.msra.mxu0 %v405
    %728 = vmatprep.subr.mxu0 %v408
    %729 = vmatpush1.msra.mxu0 %v407
    %730 = vmatprep.subr.mxu0 %v410
    %731 = vmatpush1.msra.mxu0 %v409
    %732 = vmatprep.subr.mxu0 %v412
    %733 = vmatpush1.msra.mxu0 %v411
    %734 = vmatprep.subr.mxu0 %v414
    %735 = vmatpush1.msra.mxu0 %v413
    %736 = vmatprep.subr.mxu0 %v416
    %737 = vmatpush1.msra.mxu0 %v415
    %738 = vmatprep.subr.mxu0 %v418
    %739 = vmatpush1.msra.mxu0 %v417
    %740 = vmatprep.subr.mxu0 %v420
    %741 = vmatpush1.msra.mxu0 %v419
    %742 = vmatprep.subr.mxu0 %v422
    %743 = vmatpush1.msra.mxu0 %v421
    %744 = vmatprep.subr.mxu0 %v424
    %745 = vmatpush1.msra.mxu0 %v423
    %746 = vmatprep.subr.mxu0 %v426
    %747 = vmatpush1.msra.mxu0 %v425
    %748 = vmatprep.subr.mxu0 %v428
    %749 = vmatpush1.msra.mxu0 %v427
    %750 = vmatprep.subr.mxu0 %v430
    %751 = vmatpush1.msra.mxu0 %v429
    %752 = vmatprep.subr.mxu0 %v432
    %753 = vmatpush1.msra.mxu0 %v431
    %754 = vmatprep.subr.mxu0 %v434
    %755 = vmatpush1.msra.mxu0 %v433
    %756 = vmatprep.subr.mxu0 %v436
    %757 = vmatpush1.msra.mxu0 %v435
    %758 = vmatprep.subr.mxu0 %v438
    %759 = vmatpush1.msra.mxu0 %v437
    %760 = vmatprep.subr.mxu0 %v440
    %761 = vmatpush1.msra.mxu0 %v439
    %762 = vmatprep.subr.mxu0 %v442
    %763 = vmatpush1.msra.mxu0 %v441
    %764 = vmatprep.subr.mxu0 %v444
    %765 = vmatpush1.msra.mxu0 %v443
    %766 = vmatprep.subr.mxu0 %v446
    %767 = vmatpush1.msra.mxu0 %v445
    %768 = vmatprep.mubr.f32.mxu0 %v194
    %769 = vmatmul.mubr.f32.gmra.mrb[0].mxu0 %v193
    %v770 = vpop.f32.mrb[0].mxu0
    %v771 = vadd.f32 %v514, %v770
    %v772 = vpop.f32.mrb[0].mxu0
    %v773 = vadd.f32 %v516, %v772
    %774 = vmatprep.mubr.f32.mxu0 %v198
    %775 = vmatmul.mubr.f32.gmra.mrb[0].mxu0 %v197
    %v776 = vpop.f32.mrb[0].mxu0
    %v777 = vadd.f32 %v520, %v776
    %v778 = vpop.f32.mrb[0].mxu0
    %v779 = vadd.f32 %v522, %v778
    %780 = vmatprep.mubr.f32.mxu0 %v202
    %781 = vmatmul.mubr.f32.gmra.mrb[0].mxu0 %v201
    %v782 = vpop.f32.mrb[0].mxu0
    %v783 = vadd.f32 %v526, %v782
    %v784 = vpop.f32.mrb[0].mxu0
    %v785 = vadd.f32 %v528, %v784
    %786 = vmatprep.mubr.f32.mxu0 %v206
    %787 = vmatmul.mubr.f32.gmra.mrb[0].mxu0 %v205
    %v788 = vpop.f32.mrb[0].mxu0
    %v789 = vadd.f32 %v532, %v788
    %v790 = vpop.f32.mrb[0].mxu0
    %v791 = vadd.f32 %v534, %v790
    %792 = vmatprep.mubr.f32.mxu0 %v210
    %793 = vmatmul.mubr.f32.gmra.mrb[0].mxu0 %v209
    %v794 = vpop.f32.mrb[0].mxu0
    %v795 = vadd.f32 %v538, %v794
    %v796 = vpop.f32.mrb[0].mxu0
    %v797 = vadd.f32 %v540, %v796
    %798 = vmatprep.mubr.f32.mxu0 %v214
    %799 = vmatmul.mubr.f32.gmra.mrb[0].mxu0 %v213
    %v800 = vpop.f32.mrb[0].mxu0
    %v801 = vadd.f32 %v544, %v800
    %v802 = vpop.f32.mrb[0].mxu0
    %v803 = vadd.f32 %v546, %v802
    %804 = vmatprep.mubr.f32.mxu0 %v218
    %805 = vmatmul.mubr.f32.gmra.mrb[0].mxu0 %v217
    %v806 = vpop.f32.mrb[0].mxu0
    %v807 = vadd.f32 %v550, %v806
    %v808 = vpop.f32.mrb[0].mxu0
    %v809 = vadd.f32 %v552, %v808
    %810 = vmatprep.mubr.f32.mxu0 %v222
    %811 = vmatmul.mubr.f32.gmra.mrb[0].mxu0 %v221
    %v812 = vpop.f32.mrb[0].mxu0
    %v813 = vadd.f32 %v556, %v812
    %v814 = vpop.f32.mrb[0].mxu0
    %v815 = vadd.f32 %v558, %v814
    %816 = vmatprep.mubr.f32.mxu0 %v226
    %817 = vmatmul.mubr.f32.gmra.mrb[0].mxu0 %v225
    %v818 = vpop.f32.mrb[0].mxu0
    %v819 = vadd.f32 %v562, %v818
    %v820 = vpop.f32.mrb[0].mxu0
    %v821 = vadd.f32 %v564, %v820
    %822 = vmatprep.mubr.f32.mxu0 %v230
    %823 = vmatmul.mubr.f32.gmra.mrb[0].mxu0 %v229
    %v824 = vpop.f32.mrb[0].mxu0
    %v825 = vadd.f32 %v568, %v824
    %v826 = vpop.f32.mrb[0].mxu0
    %v827 = vadd.f32 %v570, %v826
    %828 = vmatprep.mubr.f32.mxu0 %v234
    %829 = vmatmul.mubr.f32.gmra.mrb[0].mxu0 %v233
    %v830 = vpop.f32.mrb[0].mxu0
    %v831 = vadd.f32 %v574, %v830
    %v832 = vpop.f32.mrb[0].mxu0
    %v833 = vadd.f32 %v576, %v832
    %834 = vmatprep.mubr.f32.mxu0 %v238
    %835 = vmatmul.mubr.f32.gmra.mrb[0].mxu0 %v237
    %v836 = vpop.f32.mrb[0].mxu0
    %v837 = vadd.f32 %v580, %v836
    %v838 = vpop.f32.mrb[0].mxu0
    %v839 = vadd.f32 %v582, %v838
    %840 = vmatprep.mubr.f32.mxu0 %v242
    %841 = vmatmul.mubr.f32.gmra.mrb[0].mxu0 %v241
    %v842 = vpop.f32.mrb[0].mxu0
    %v843 = vadd.f32 %v586, %v842
    %v844 = vpop.f32.mrb[0].mxu0
    %v845 = vadd.f32 %v588, %v844
    %846 = vmatprep.mubr.f32.mxu0 %v246
    %847 = vmatmul.mubr.f32.gmra.mrb[0].mxu0 %v245
    %v848 = vpop.f32.mrb[0].mxu0
    %v849 = vadd.f32 %v592, %v848
    %v850 = vpop.f32.mrb[0].mxu0
    %v851 = vadd.f32 %v594, %v850
    %852 = vmatprep.mubr.f32.mxu0 %v250
    %853 = vmatmul.mubr.f32.gmra.mrb[0].mxu0 %v249
    %v854 = vpop.f32.mrb[0].mxu0
    %v855 = vadd.f32 %v598, %v854
    %v856 = vpop.f32.mrb[0].mxu0
    %v857 = vadd.f32 %v600, %v856
    %858 = vmatprep.mubr.f32.mxu0 %v254
    %859 = vmatmul.mubr.f32.gmra.mrb[0].mxu0 %v253
    %v860 = vpop.f32.mrb[0].mxu0
    %v861 = vadd.f32 %v604, %v860
    %v862 = vpop.f32.mrb[0].mxu0
    %v863 = vadd.f32 %v606, %v862
    %864 = vmatprep.mubr.f32.mxu0 %v258
    %865 = vmatmul.mubr.f32.gmra.mrb[0].mxu0 %v257
    %v866 = vpop.f32.mrb[0].mxu0
    %v867 = vadd.f32 %v610, %v866
    %v868 = vpop.f32.mrb[0].mxu0
    %v869 = vadd.f32 %v612, %v868
    %870 = vmatprep.mubr.f32.mxu0 %v262
    %871 = vmatmul.mubr.f32.gmra.mrb[0].mxu0 %v261
    %v872 = vpop.f32.mrb[0].mxu0
    %v873 = vadd.f32 %v616, %v872
    %v874 = vpop.f32.mrb[0].mxu0
    %v875 = vadd.f32 %v618, %v874
    %876 = vmatprep.mubr.f32.mxu0 %v266
    %877 = vmatmul.mubr.f32.gmra.mrb[0].mxu0 %v265
    %v878 = vpop.f32.mrb[0].mxu0
    %v879 = vadd.f32 %v622, %v878
    %v880 = vpop.f32.mrb[0].mxu0
    %v881 = vadd.f32 %v624, %v880
    %882 = vmatprep.mubr.f32.mxu0 %v270
    %883 = vmatmul.mubr.f32.gmra.mrb[0].mxu0 %v269
    %v884 = vpop.f32.mrb[0].mxu0
    %v885 = vadd.f32 %v628, %v884
    %v886 = vpop.f32.mrb[0].mxu0
    %v887 = vadd.f32 %v630, %v886
    %888 = vmatprep.mubr.f32.mxu0 %v274
    %889 = vmatmul.mubr.f32.gmra.mrb[0].mxu0 %v273
    %v890 = vpop.f32.mrb[0].mxu0
    %v891 = vadd.f32 %v634, %v890
    %v892 = vpop.f32.mrb[0].mxu0
    %v893 = vadd.f32 %v636, %v892
    %894 = vmatprep.mubr.f32.mxu0 %v278
    %895 = vmatmul.mubr.f32.gmra.mrb[0].mxu0 %v277
    %v896 = vpop.f32.mrb[0].mxu0
    %v897 = vadd.f32 %v640, %v896
    %v898 = vpop.f32.mrb[0].mxu0
    %v899 = vadd.f32 %v642, %v898
    %900 = vmatprep.mubr.f32.mxu0 %v282
    %901 = vmatmul.mubr.f32.gmra.mrb[0].mxu0 %v281
    %v902 = vpop.f32.mrb[0].mxu0
    %v903 = vadd.f32 %v646, %v902
    %v904 = vpop.f32.mrb[0].mxu0
    %v905 = vadd.f32 %v648, %v904
    %906 = vmatprep.mubr.f32.mxu0 %v286
    %907 = vmatmul.mubr.f32.gmra.mrb[0].mxu0 %v285
    %v908 = vpop.f32.mrb[0].mxu0
    %v909 = vadd.f32 %v652, %v908
    %v910 = vpop.f32.mrb[0].mxu0
    %v911 = vadd.f32 %v654, %v910
    %912 = vmatprep.mubr.f32.mxu0 %v290
    %913 = vmatmul.mubr.f32.gmra.mrb[0].mxu0 %v289
    %v914 = vpop.f32.mrb[0].mxu0
    %v915 = vadd.f32 %v658, %v914
    %v916 = vpop.f32.mrb[0].mxu0
    %v917 = vadd.f32 %v660, %v916
    %918 = vmatprep.mubr.f32.mxu0 %v294
    %919 = vmatmul.mubr.f32.gmra.mrb[0].mxu0 %v293
    %v920 = vpop.f32.mrb[0].mxu0
    %v921 = vadd.f32 %v664, %v920
    %v922 = vpop.f32.mrb[0].mxu0
    %v923 = vadd.f32 %v666, %v922
    %924 = vmatprep.mubr.f32.mxu0 %v298
    %925 = vmatmul.mubr.f32.gmra.mrb[0].mxu0 %v297
    %v926 = vpop.f32.mrb[0].mxu0
    %v927 = vadd.f32 %v670, %v926
    %v928 = vpop.f32.mrb[0].mxu0
    %v929 = vadd.f32 %v672, %v928
    %930 = vmatprep.mubr.f32.mxu0 %v302
    %931 = vmatmul.mubr.f32.gmra.mrb[0].mxu0 %v301
    %v932 = vpop.f32.mrb[0].mxu0
    %v933 = vadd.f32 %v676, %v932
    %v934 = vpop.f32.mrb[0].mxu0
    %v935 = vadd.f32 %v678, %v934
    %936 = vmatprep.mubr.f32.mxu0 %v306
    %937 = vmatmul.mubr.f32.gmra.mrb[0].mxu0 %v305
    %v938 = vpop.f32.mrb[0].mxu0
    %v939 = vadd.f32 %v682, %v938
    %v940 = vpop.f32.mrb[0].mxu0
    %v941 = vadd.f32 %v684, %v940
    %942 = vmatprep.mubr.f32.mxu0 %v310
    %943 = vmatmul.mubr.f32.gmra.mrb[0].mxu0 %v309
    %v944 = vpop.f32.mrb[0].mxu0
    %v945 = vadd.f32 %v688, %v944
    %v946 = vpop.f32.mrb[0].mxu0
    %v947 = vadd.f32 %v690, %v946
    %948 = vmatprep.mubr.f32.mxu0 %v314
    %949 = vmatmul.mubr.f32.gmra.mrb[0].mxu0 %v313
    %v950 = vpop.f32.mrb[0].mxu0
    %v951 = vadd.f32 %v694, %v950
    %v952 = vpop.f32.mrb[0].mxu0
    %v953 = vadd.f32 %v696, %v952
    %954 = vmatprep.mubr.f32.mxu0 %v318
    %955 = vmatmul.mubr.f32.gmra.mrb[0].mxu0 %v317
    %v956 = vpop.f32.mrb[0].mxu0
    %v957 = vadd.f32 %v700, %v956
    %v958 = vpop.f32.mrb[0].mxu0
    %v959 = vadd.f32 %v702, %v958
    %960 = vdwg.mxu0
    %v961 = vadd.f32 %v127, %v771
    %v962 = vadd.f32 %v128, %v773
    %v963 = vadd.f32 %v129, %v777
    %v964 = vadd.f32 %v130, %v779
    %v965 = vadd.f32 %v131, %v783
    %v966 = vadd.f32 %v132, %v785
    %v967 = vadd.f32 %v133, %v789
    %v968 = vadd.f32 %v134, %v791
    %v969 = vadd.f32 %v135, %v795
    %v970 = vadd.f32 %v136, %v797
    %v971 = vadd.f32 %v137, %v801
    %v972 = vadd.f32 %v138, %v803
    %v973 = vadd.f32 %v139, %v807
    %v974 = vadd.f32 %v140, %v809
    %v975 = vadd.f32 %v141, %v813
    %v976 = vadd.f32 %v142, %v815
    %v977 = vadd.f32 %v143, %v819
    %v978 = vadd.f32 %v144, %v821
    %v979 = vadd.f32 %v145, %v825
    %v980 = vadd.f32 %v146, %v827
    %v981 = vadd.f32 %v147, %v831
    %v982 = vadd.f32 %v148, %v833
    %v983 = vadd.f32 %v149, %v837
    %v984 = vadd.f32 %v150, %v839
    %v985 = vadd.f32 %v151, %v843
    %v986 = vadd.f32 %v152, %v845
    %v987 = vadd.f32 %v153, %v849
    %v988 = vadd.f32 %v154, %v851
    %v989 = vadd.f32 %v155, %v855
    %v990 = vadd.f32 %v156, %v857
    %v991 = vadd.f32 %v157, %v861
    %v992 = vadd.f32 %v158, %v863
    %v993 = vadd.f32 %v159, %v867
    %v994 = vadd.f32 %v160, %v869
    %v995 = vadd.f32 %v161, %v873
    %v996 = vadd.f32 %v162, %v875
    %v997 = vadd.f32 %v163, %v879
    %v998 = vadd.f32 %v164, %v881
    %v999 = vadd.f32 %v165, %v885
    %v1000 = vadd.f32 %v166, %v887
    %v1001 = vadd.f32 %v167, %v891
    %v1002 = vadd.f32 %v168, %v893
    %v1003 = vadd.f32 %v169, %v897
    %v1004 = vadd.f32 %v170, %v899
    %v1005 = vadd.f32 %v171, %v903
    %v1006 = vadd.f32 %v172, %v905
    %v1007 = vadd.f32 %v173, %v909
    %v1008 = vadd.f32 %v174, %v911
    %v1009 = vadd.f32 %v175, %v915
    %v1010 = vadd.f32 %v176, %v917
    %v1011 = vadd.f32 %v177, %v921
    %v1012 = vadd.f32 %v178, %v923
    %v1013 = vadd.f32 %v179, %v927
    %v1014 = vadd.f32 %v180, %v929
    %v1015 = vadd.f32 %v181, %v933
    %v1016 = vadd.f32 %v182, %v935
    %v1017 = vadd.f32 %v183, %v939
    %v1018 = vadd.f32 %v184, %v941
    %v1019 = vadd.f32 %v185, %v945
    %v1020 = vadd.f32 %v186, %v947
    %v1021 = vadd.f32 %v187, %v951
    %v1022 = vadd.f32 %v188, %v953
    %v1023 = vadd.f32 %v189, %v957
    %v1024 = vadd.f32 %v190, %v959
    %1025 = vst [vmem:[#allocation8] sm:$0xff] %v961
    %1026 = vst [vmem:[#allocation8 + $0x8] sm:$0xff] %v962
    %1027 = vst [vmem:[#allocation8 + $0x10] sm:$0xff] %v963
    %1028 = vst [vmem:[#allocation8 + $0x18] sm:$0xff] %v964
    %1029 = vst [vmem:[#allocation8 + $0x20] sm:$0xff] %v965
    %1030 = vst [vmem:[#allocation8 + $0x28] sm:$0xff] %v966
    %1031 = vst [vmem:[#allocation8 + $0x30] sm:$0xff] %v967
    %1032 = vst [vmem:[#allocation8 + $0x38] sm:$0xff] %v968
    %1033 = vst [vmem:[#allocation8 + $0x40] sm:$0xff] %v969
    %1034 = vst [vmem:[#allocation8 + $0x48] sm:$0xff] %v970
    %1035 = vst [vmem:[#allocation8 + $0x50] sm:$0xff] %v971
    %1036 = vst [vmem:[#allocation8 + $0x58] sm:$0xff] %v972
    %1037 = vst [vmem:[#allocation8 + $0x60] sm:$0xff] %v973
    %1038 = vst [vmem:[#allocation8 + $0x68] sm:$0xff] %v974
    %1039 = vst [vmem:[#allocation8 + $0x70] sm:$0xff] %v975
    %1040 = vst [vmem:[#allocation8 + $0x78] sm:$0xff] %v976
    %1041 = vst [vmem:[#allocation8 + $0x80] sm:$0xff] %v977
    %1042 = vst [vmem:[#allocation8 + $0x88] sm:$0xff] %v978
    %1043 = vst [vmem:[#allocation8 + $0x90] sm:$0xff] %v979
    %1044 = vst [vmem:[#allocation8 + $0x98] sm:$0xff] %v980
    %1045 = vst [vmem:[#allocation8 + $0xa0] sm:$0xff] %v981
    %1046 = vst [vmem:[#allocation8 + $0xa8] sm:$0xff] %v982
    %1047 = vst [vmem:[#allocation8 + $0xb0] sm:$0xff] %v983
    %1048 = vst [vmem:[#allocation8 + $0xb8] sm:$0xff] %v984
    %1049 = vst [vmem:[#allocation8 + $0xc0] sm:$0xff] %v985
    %1050 = vst [vmem:[#allocation8 + $0xc8] sm:$0xff] %v986
    %1051 = vst [vmem:[#allocation8 + $0xd0] sm:$0xff] %v987
    %1052 = vst [vmem:[#allocation8 + $0xd8] sm:$0xff] %v988
    %1053 = vst [vmem:[#allocation8 + $0xe0] sm:$0xff] %v989
    %1054 = vst [vmem:[#allocation8 + $0xe8] sm:$0xff] %v990
    %1055 = vst [vmem:[#allocation8 + $0xf0] sm:$0xff] %v991
    %1056 = vst [vmem:[#allocation8 + $0xf8] sm:$0xff] %v992
    %1057 = vst [vmem:[#allocation8 + $0x100] sm:$0xff] %v993
    %1058 = vst [vmem:[#allocation8 + $0x108] sm:$0xff] %v994
    %1059 = vst [vmem:[#allocation8 + $0x110] sm:$0xff] %v995
    %1060 = vst [vmem:[#allocation8 + $0x118] sm:$0xff] %v996
    %1061 = vst [vmem:[#allocation8 + $0x120] sm:$0xff] %v997
    %1062 = vst [vmem:[#allocation8 + $0x128] sm:$0xff] %v998
    %1063 = vst [vmem:[#allocation8 + $0x130] sm:$0xff] %v999
    %1064 = vst [vmem:[#allocation8 + $0x138] sm:$0xff] %v1000
    %1065 = vst [vmem:[#allocation8 + $0x140] sm:$0xff] %v1001
    %1066 = vst [vmem:[#allocation8 + $0x148] sm:$0xff] %v1002
    %1067 = vst [vmem:[#allocation8 + $0x150] sm:$0xff] %v1003
    %1068 = vst [vmem:[#allocation8 + $0x158] sm:$0xff] %v1004
    %1069 = vst [vmem:[#allocation8 + $0x160] sm:$0xff] %v1005
    %1070 = vst [vmem:[#allocation8 + $0x168] sm:$0xff] %v1006
    %1071 = vst [vmem:[#allocation8 + $0x170] sm:$0xff] %v1007
    %1072 = vst [vmem:[#allocation8 + $0x178] sm:$0xff] %v1008
    %1073 = vst [vmem:[#allocation8 + $0x180] sm:$0xff] %v1009
    %1074 = vst [vmem:[#allocation8 + $0x188] sm:$0xff] %v1010
    %1075 = vst [vmem:[#allocation8 + $0x190] sm:$0xff] %v1011
    %1076 = vst [vmem:[#allocation8 + $0x198] sm:$0xff] %v1012
    %1077 = vst [vmem:[#allocation8 + $0x1a0] sm:$0xff] %v1013
    %1078 = vst [vmem:[#allocation8 + $0x1a8] sm:$0xff] %v1014
    %1079 = vst [vmem:[#allocation8 + $0x1b0] sm:$0xff] %v1015
    %1080 = vst [vmem:[#allocation8 + $0x1b8] sm:$0xff] %v1016
    %1081 = vst [vmem:[#allocation8 + $0x1c0] sm:$0xff] %v1017
    %1082 = vst [vmem:[#allocation8 + $0x1c8] sm:$0xff] %v1018
    %1083 = vst [vmem:[#allocation8 + $0x1d0] sm:$0xff] %v1019
    %1084 = vst [vmem:[#allocation8 + $0x1d8] sm:$0xff] %v1020
    %1085 = vst [vmem:[#allocation8 + $0x1e0] sm:$0xff] %v1021
    %1086 = vst [vmem:[#allocation8 + $0x1e8] sm:$0xff] %v1022
    %1087 = vst [vmem:[#allocation8 + $0x1f0] sm:$0xff] %v1023
    %1088 = vst [vmem:[#allocation8 + $0x1f8] sm:$0xff] %v1024
    // Predicated region
    $region34: #{tpu_custom_call.1} parent=1 // pred_check
      %p1089 = pneg %p59
    $region35: #{tpu_custom_call.1} parent=1 // pred_check_branch
      %1091 = sbr.rel (%p1089) target = $region37
    $region36: #{tpu_custom_call.1} parent=1 // pred_region
      %v1092 = vld [vmem:[#allocation7] sm:$0xff]
      %v1093 = vld [vmem:[#allocation7 + $0x8] sm:$0xff]
      %v1094 = vld [vmem:[#allocation7 + $0x10] sm:$0xff]
      %v1095 = vld [vmem:[#allocation7 + $0x18] sm:$0xff]
      %v1096 = vld [vmem:[#allocation7 + $0x20] sm:$0xff]
      %v1097 = vld [vmem:[#allocation7 + $0x28] sm:$0xff]
      %v1098 = vld [vmem:[#allocation7 + $0x30] sm:$0xff]
      %v1099 = vld [vmem:[#allocation7 + $0x38] sm:$0xff]
      %v1100 = vld [vmem:[#allocation7 + $0x40] sm:$0xff]
      %v1101 = vld [vmem:[#allocation7 + $0x48] sm:$0xff]
      %v1102 = vld [vmem:[#allocation7 + $0x50] sm:$0xff]
      %v1103 = vld [vmem:[#allocation7 + $0x58] sm:$0xff]
      %v1104 = vld [vmem:[#allocation7 + $0x60] sm:$0xff]
      %v1105 = vld [vmem:[#allocation7 + $0x68] sm:$0xff]
      %v1106 = vld [vmem:[#allocation7 + $0x70] sm:$0xff]
      %v1107 = vld [vmem:[#allocation7 + $0x78] sm:$0xff]
      %v1108 = vld [vmem:[#allocation7 + $0x80] sm:$0xff]
      %v1109 = vld [vmem:[#allocation7 + $0x88] sm:$0xff]
      %v1110 = vld [vmem:[#allocation7 + $0x90] sm:$0xff]
      %v1111 = vld [vmem:[#allocation7 + $0x98] sm:$0xff]
      %v1112 = vld [vmem:[#allocation7 + $0xa0] sm:$0xff]
      %v1113 = vld [vmem:[#allocation7 + $0xa8] sm:$0xff]
      %v1114 = vld [vmem:[#allocation7 + $0xb0] sm:$0xff]
      %v1115 = vld [vmem:[#allocation7 + $0xb8] sm:$0xff]
      %v1116 = vld [vmem:[#allocation7 + $0xc0] sm:$0xff]
      %v1117 = vld [vmem:[#allocation7 + $0xc8] sm:$0xff]
      %v1118 = vld [vmem:[#allocation7 + $0xd0] sm:$0xff]
      %v1119 = vld [vmem:[#allocation7 + $0xd8] sm:$0xff]
      %v1120 = vld [vmem:[#allocation7 + $0xe0] sm:$0xff]
      %v1121 = vld [vmem:[#allocation7 + $0xe8] sm:$0xff]
      %v1122 = vld [vmem:[#allocation7 + $0xf0] sm:$0xff]
      %v1123 = vld [vmem:[#allocation7 + $0xf8] sm:$0xff]
      %v1124 = vld [vmem:[#allocation7 + $0x100] sm:$0xff]
      %v1125 = vld [vmem:[#allocation7 + $0x108] sm:$0xff]
      %v1126 = vld [vmem:[#allocation7 + $0x110] sm:$0xff]
      %v1127 = vld [vmem:[#allocation7 + $0x118] sm:$0xff]
      %v1128 = vld [vmem:[#allocation7 + $0x120] sm:$0xff]
      %v1129 = vld [vmem:[#allocation7 + $0x128] sm:$0xff]
      %v1130 = vld [vmem:[#allocation7 + $0x130] sm:$0xff]
      %v1131 = vld [vmem:[#allocation7 + $0x138] sm:$0xff]
      %v1132 = vld [vmem:[#allocation7 + $0x140] sm:$0xff]
      %v1133 = vld [vmem:[#allocation7 + $0x148] sm:$0xff]
      %v1134 = vld [vmem:[#allocation7 + $0x150] sm:$0xff]
      %v1135 = vld [vmem:[#allocation7 + $0x158] sm:$0xff]
      %v1136 = vld [vmem:[#allocation7 + $0x160] sm:$0xff]
      %v1137 = vld [vmem:[#allocation7 + $0x168] sm:$0xff]
      %v1138 = vld [vmem:[#allocation7 + $0x170] sm:$0xff]
      %v1139 = vld [vmem:[#allocation7 + $0x178] sm:$0xff]
      %v1140 = vld [vmem:[#allocation7 + $0x180] sm:$0xff]
      %v1141 = vld [vmem:[#allocation7 + $0x188] sm:$0xff]
      %v1142 = vld [vmem:[#allocation7 + $0x190] sm:$0xff]
      %v1143 = vld [vmem:[#allocation7 + $0x198] sm:$0xff]
      %v1144 = vld [vmem:[#allocation7 + $0x1a0] sm:$0xff]
      %v1145 = vld [vmem:[#allocation7 + $0x1a8] sm:$0xff]
      %v1146 = vld [vmem:[#allocation7 + $0x1b0] sm:$0xff]
      %v1147 = vld [vmem:[#allocation7 + $0x1b8] sm:$0xff]
      %v1148 = vld [vmem:[#allocation7 + $0x1c0] sm:$0xff]
      %v1149 = vld [vmem:[#allocation7 + $0x1c8] sm:$0xff]
      %v1150 = vld [vmem:[#allocation7 + $0x1d0] sm:$0xff]
      %v1151 = vld [vmem:[#allocation7 + $0x1d8] sm:$0xff]
      %v1152 = vld [vmem:[#allocation7 + $0x1e0] sm:$0xff]
      %v1153 = vld [vmem:[#allocation7 + $0x1e8] sm:$0xff]
      %v1154 = vld [vmem:[#allocation7 + $0x1f0] sm:$0xff]
      %v1155 = vld [vmem:[#allocation7 + $0x1f8] sm:$0xff]
      %v1156 = vld [vmem:[#allocation8] sm:$0xff]
      %v1157 = vld [vmem:[#allocation8 + $0x8] sm:$0xff]
      %v1158 = vld [vmem:[#allocation8 + $0x10] sm:$0xff]
      %v1159 = vld [vmem:[#allocation8 + $0x18] sm:$0xff]
      %v1160 = vld [vmem:[#allocation8 + $0x20] sm:$0xff]
      %v1161 = vld [vmem:[#allocation8 + $0x28] sm:$0xff]
      %v1162 = vld [vmem:[#allocation8 + $0x30] sm:$0xff]
      %v1163 = vld [vmem:[#allocation8 + $0x38] sm:$0xff]
      %v1164 = vld [vmem:[#allocation8 + $0x40] sm:$0xff]
      %v1165 = vld [vmem:[#allocation8 + $0x48] sm:$0xff]
      %v1166 = vld [vmem:[#allocation8 + $0x50] sm:$0xff]
      %v1167 = vld [vmem:[#allocation8 + $0x58] sm:$0xff]
      %v1168 = vld [vmem:[#allocation8 + $0x60] sm:$0xff]
      %v1169 = vld [vmem:[#allocation8 + $0x68] sm:$0xff]
      %v1170 = vld [vmem:[#allocation8 + $0x70] sm:$0xff]
      %v1171 = vld [vmem:[#allocation8 + $0x78] sm:$0xff]
      %v1172 = vld [vmem:[#allocation8 + $0x80] sm:$0xff]
      %v1173 = vld [vmem:[#allocation8 + $0x88] sm:$0xff]
      %v1174 = vld [vmem:[#allocation8 + $0x90] sm:$0xff]
      %v1175 = vld [vmem:[#allocation8 + $0x98] sm:$0xff]
      %v1176 = vld [vmem:[#allocation8 + $0xa0] sm:$0xff]
      %v1177 = vld [vmem:[#allocation8 + $0xa8] sm:$0xff]
      %v1178 = vld [vmem:[#allocation8 + $0xb0] sm:$0xff]
      %v1179 = vld [vmem:[#allocation8 + $0xb8] sm:$0xff]
      %v1180 = vld [vmem:[#allocation8 + $0xc0] sm:$0xff]
      %v1181 = vld [vmem:[#allocation8 + $0xc8] sm:$0xff]
      %v1182 = vld [vmem:[#allocation8 + $0xd0] sm:$0xff]
      %v1183 = vld [vmem:[#allocation8 + $0xd8] sm:$0xff]
      %v1184 = vld [vmem:[#allocation8 + $0xe0] sm:$0xff]
      %v1185 = vld [vmem:[#allocation8 + $0xe8] sm:$0xff]
      %v1186 = vld [vmem:[#allocation8 + $0xf0] sm:$0xff]
      %v1187 = vld [vmem:[#allocation8 + $0xf8] sm:$0xff]
      %v1188 = vld [vmem:[#allocation8 + $0x100] sm:$0xff]
      %v1189 = vld [vmem:[#allocation8 + $0x108] sm:$0xff]
      %v1190 = vld [vmem:[#allocation8 + $0x110] sm:$0xff]
      %v1191 = vld [vmem:[#allocation8 + $0x118] sm:$0xff]
      %v1192 = vld [vmem:[#allocation8 + $0x120] sm:$0xff]
      %v1193 = vld [vmem:[#allocation8 + $0x128] sm:$0xff]
      %v1194 = vld [vmem:[#allocation8 + $0x130] sm:$0xff]
      %v1195 = vld [vmem:[#allocation8 + $0x138] sm:$0xff]
      %v1196 = vld [vmem:[#allocation8 + $0x140] sm:$0xff]
      %v1197 = vld [vmem:[#allocation8 + $0x148] sm:$0xff]
      %v1198 = vld [vmem:[#allocation8 + $0x150] sm:$0xff]
      %v1199 = vld [vmem:[#allocation8 + $0x158] sm:$0xff]
      %v1200 = vld [vmem:[#allocation8 + $0x160] sm:$0xff]
      %v1201 = vld [vmem:[#allocation8 + $0x168] sm:$0xff]
      %v1202 = vld [vmem:[#allocation8 + $0x170] sm:$0xff]
      %v1203 = vld [vmem:[#allocation8 + $0x178] sm:$0xff]
      %v1204 = vld [vmem:[#allocation8 + $0x180] sm:$0xff]
      %v1205 = vld [vmem:[#allocation8 + $0x188] sm:$0xff]
      %v1206 = vld [vmem:[#allocation8 + $0x190] sm:$0xff]
      %v1207 = vld [vmem:[#allocation8 + $0x198] sm:$0xff]
      %v1208 = vld [vmem:[#allocation8 + $0x1a0] sm:$0xff]
      %v1209 = vld [vmem:[#allocation8 + $0x1a8] sm:$0xff]
      %v1210 = vld [vmem:[#allocation8 + $0x1b0] sm:$0xff]
      %v1211 = vld [vmem:[#allocation8 + $0x1b8] sm:$0xff]
      %v1212 = vld [vmem:[#allocation8 + $0x1c0] sm:$0xff]
      %v1213 = vld [vmem:[#allocation8 + $0x1c8] sm:$0xff]
      %v1214 = vld [vmem:[#allocation8 + $0x1d0] sm:$0xff]
      %v1215 = vld [vmem:[#allocation8 + $0x1d8] sm:$0xff]
      %v1216 = vld [vmem:[#allocation8 + $0x1e0] sm:$0xff]
      %v1217 = vld [vmem:[#allocation8 + $0x1e8] sm:$0xff]
      %v1218 = vld [vmem:[#allocation8 + $0x1f0] sm:$0xff]
      %v1219 = vld [vmem:[#allocation8 + $0x1f8] sm:$0xff]
      %v1220 = vld [vmem:[%s2] sm:$0x3]
      %v1222 = vlaneseq
      %v1223 = vshrl.u32 %v1222, 7
      %v1224 = vsub.s32 0, %v1223
      %v1225 = vrot.slane %v1220, %v1224
      %v1226 = vlaneseq
      %v1227 = vshrl.u32 %v1226, 7
      %v1228 = vsub.s32 1, %v1227
      %v1229 = vrot.slane %v1220, %v1228
      %v1232 = vadd.f32 %v1156, %v1225
      %v1233 = vadd.f32 %v1157, %v1229
      %v1234 = vadd.f32 %v1158, %v1225
      %v1235 = vadd.f32 %v1159, %v1229
      %v1236 = vadd.f32 %v1160, %v1225
      %v1237 = vadd.f32 %v1161, %v1229
      %v1238 = vadd.f32 %v1162, %v1225
      %v1239 = vadd.f32 %v1163, %v1229
      %v1240 = vadd.f32 %v1164, %v1225
      %v1241 = vadd.f32 %v1165, %v1229
      %v1242 = vadd.f32 %v1166, %v1225
      %v1243 = vadd.f32 %v1167, %v1229
      %v1244 = vadd.f32 %v1168, %v1225
      %v1245 = vadd.f32 %v1169, %v1229
      %v1246 = vadd.f32 %v1170, %v1225
      %v1247 = vadd.f32 %v1171, %v1229
      %v1248 = vadd.f32 %v1172, %v1225
      %v1249 = vadd.f32 %v1173, %v1229
      %v1250 = vadd.f32 %v1174, %v1225
      %v1251 = vadd.f32 %v1175, %v1229
      %v1252 = vadd.f32 %v1176, %v1225
      %v1253 = vadd.f32 %v1177, %v1229
      %v1254 = vadd.f32 %v1178, %v1225
      %v1255 = vadd.f32 %v1179, %v1229
      %v1256 = vadd.f32 %v1180, %v1225
      %v1257 = vadd.f32 %v1181, %v1229
      %v1258 = vadd.f32 %v1182, %v1225
      %v1259 = vadd.f32 %v1183, %v1229
      %v1260 = vadd.f32 %v1184, %v1225
      %v1261 = vadd.f32 %v1185, %v1229
      %v1262 = vadd.f32 %v1186, %v1225
      %v1263 = vadd.f32 %v1187, %v1229
      %v1264 = vadd.f32 %v1188, %v1225
      %v1265 = vadd.f32 %v1189, %v1229
      %v1266 = vadd.f32 %v1190, %v1225
      %v1267 = vadd.f32 %v1191, %v1229
      %v1268 = vadd.f32 %v1192, %v1225
      %v1269 = vadd.f32 %v1193, %v1229
      %v1270 = vadd.f32 %v1194, %v1225
      %v1271 = vadd.f32 %v1195, %v1229
      %v1272 = vadd.f32 %v1196, %v1225
      %v1273 = vadd.f32 %v1197, %v1229
      %v1274 = vadd.f32 %v1198, %v1225
      %v1275 = vadd.f32 %v1199, %v1229
      %v1276 = vadd.f32 %v1200, %v1225
      %v1277 = vadd.f32 %v1201, %v1229
      %v1278 = vadd.f32 %v1202, %v1225
      %v1279 = vadd.f32 %v1203, %v1229
      %v1280 = vadd.f32 %v1204, %v1225
      %v1281 = vadd.f32 %v1205, %v1229
      %v1282 = vadd.f32 %v1206, %v1225
      %v1283 = vadd.f32 %v1207, %v1229
      %v1284 = vadd.f32 %v1208, %v1225
      %v1285 = vadd.f32 %v1209, %v1229
      %v1286 = vadd.f32 %v1210, %v1225
      %v1287 = vadd.f32 %v1211, %v1229
      %v1288 = vadd.f32 %v1212, %v1225
      %v1289 = vadd.f32 %v1213, %v1229
      %v1290 = vadd.f32 %v1214, %v1225
      %v1291 = vadd.f32 %v1215, %v1229
      %v1292 = vadd.f32 %v1216, %v1225
      %v1293 = vadd.f32 %v1217, %v1229
      %v1294 = vadd.f32 %v1218, %v1225
      %v1295 = vadd.f32 %v1219, %v1229
      %v1296 = vmul.f32 %v1232, %v1092
      %v1297 = vmul.f32 %v1233, %v1093
      %v1298 = vmul.f32 %v1234, %v1094
      %v1299 = vmul.f32 %v1235, %v1095
      %v1300 = vmul.f32 %v1236, %v1096
      %v1301 = vmul.f32 %v1237, %v1097
      %v1302 = vmul.f32 %v1238, %v1098
      %v1303 = vmul.f32 %v1239, %v1099
      %v1304 = vmul.f32 %v1240, %v1100
      %v1305 = vmul.f32 %v1241, %v1101
      %v1306 = vmul.f32 %v1242, %v1102
      %v1307 = vmul.f32 %v1243, %v1103
      %v1308 = vmul.f32 %v1244, %v1104
      %v1309 = vmul.f32 %v1245, %v1105
      %v1310 = vmul.f32 %v1246, %v1106
      %v1311 = vmul.f32 %v1247, %v1107
      %v1312 = vmul.f32 %v1248, %v1108
      %v1313 = vmul.f32 %v1249, %v1109
      %v1314 = vmul.f32 %v1250, %v1110
      %v1315 = vmul.f32 %v1251, %v1111
      %v1316 = vmul.f32 %v1252, %v1112
      %v1317 = vmul.f32 %v1253, %v1113
      %v1318 = vmul.f32 %v1254, %v1114
      %v1319 = vmul.f32 %v1255, %v1115
      %v1320 = vmul.f32 %v1256, %v1116
      %v1321 = vmul.f32 %v1257, %v1117
      %v1322 = vmul.f32 %v1258, %v1118
      %v1323 = vmul.f32 %v1259, %v1119
      %v1324 = vmul.f32 %v1260, %v1120
      %v1325 = vmul.f32 %v1261, %v1121
      %v1326 = vmul.f32 %v1262, %v1122
      %v1327 = vmul.f32 %v1263, %v1123
      %v1328 = vmul.f32 %v1264, %v1124
      %v1329 = vmul.f32 %v1265, %v1125
      %v1330 = vmul.f32 %v1266, %v1126
      %v1331 = vmul.f32 %v1267, %v1127
      %v1332 = vmul.f32 %v1268, %v1128
      %v1333 = vmul.f32 %v1269, %v1129
      %v1334 = vmul.f32 %v1270, %v1130
      %v1335 = vmul.f32 %v1271, %v1131
      %v1336 = vmul.f32 %v1272, %v1132
      %v1337 = vmul.f32 %v1273, %v1133
      %v1338 = vmul.f32 %v1274, %v1134
      %v1339 = vmul.f32 %v1275, %v1135
      %v1340 = vmul.f32 %v1276, %v1136
      %v1341 = vmul.f32 %v1277, %v1137
      %v1342 = vmul.f32 %v1278, %v1138
      %v1343 = vmul.f32 %v1279, %v1139
      %v1344 = vmul.f32 %v1280, %v1140
      %v1345 = vmul.f32 %v1281, %v1141
      %v1346 = vmul.f32 %v1282, %v1142
      %v1347 = vmul.f32 %v1283, %v1143
      %v1348 = vmul.f32 %v1284, %v1144
      %v1349 = vmul.f32 %v1285, %v1145
      %v1350 = vmul.f32 %v1286, %v1146
      %v1351 = vmul.f32 %v1287, %v1147
      %v1352 = vmul.f32 %v1288, %v1148
      %v1353 = vmul.f32 %v1289, %v1149
      %v1354 = vmul.f32 %v1290, %v1150
      %v1355 = vmul.f32 %v1291, %v1151
      %v1356 = vmul.f32 %v1292, %v1152
      %v1357 = vmul.f32 %v1293, %v1153
      %v1358 = vmul.f32 %v1294, %v1154
      %v1359 = vmul.f32 %v1295, %v1155
      %1360 = vst [vmem:[#allocation8] sm:$0xff] %v1296
      %1361 = vst [vmem:[#allocation8 + $0x8] sm:$0xff] %v1297
      %1362 = vst [vmem:[#allocation8 + $0x10] sm:$0xff] %v1298
      %1363 = vst [vmem:[#allocation8 + $0x18] sm:$0xff] %v1299
      %1364 = vst [vmem:[#allocation8 + $0x20] sm:$0xff] %v1300
      %1365 = vst [vmem:[#allocation8 + $0x28] sm:$0xff] %v1301
      %1366 = vst [vmem:[#allocation8 + $0x30] sm:$0xff] %v1302
      %1367 = vst [vmem:[#allocation8 + $0x38] sm:$0xff] %v1303
      %1368 = vst [vmem:[#allocation8 + $0x40] sm:$0xff] %v1304
      %1369 = vst [vmem:[#allocation8 + $0x48] sm:$0xff] %v1305
      %1370 = vst [vmem:[#allocation8 + $0x50] sm:$0xff] %v1306
      %1371 = vst [vmem:[#allocation8 + $0x58] sm:$0xff] %v1307
      %1372 = vst [vmem:[#allocation8 + $0x60] sm:$0xff] %v1308
      %1373 = vst [vmem:[#allocation8 + $0x68] sm:$0xff] %v1309
      %1374 = vst [vmem:[#allocation8 + $0x70] sm:$0xff] %v1310
      %1375 = vst [vmem:[#allocation8 + $0x78] sm:$0xff] %v1311
      %1376 = vst [vmem:[#allocation8 + $0x80] sm:$0xff] %v1312
      %1377 = vst [vmem:[#allocation8 + $0x88] sm:$0xff] %v1313
      %1378 = vst [vmem:[#allocation8 + $0x90] sm:$0xff] %v1314
      %1379 = vst [vmem:[#allocation8 + $0x98] sm:$0xff] %v1315
      %1380 = vst [vmem:[#allocation8 + $0xa0] sm:$0xff] %v1316
      %1381 = vst [vmem:[#allocation8 + $0xa8] sm:$0xff] %v1317
      %1382 = vst [vmem:[#allocation8 + $0xb0] sm:$0xff] %v1318
      %1383 = vst [vmem:[#allocation8 + $0xb8] sm:$0xff] %v1319
      %1384 = vst [vmem:[#allocation8 + $0xc0] sm:$0xff] %v1320
      %1385 = vst [vmem:[#allocation8 + $0xc8] sm:$0xff] %v1321
      %1386 = vst [vmem:[#allocation8 + $0xd0] sm:$0xff] %v1322
      %1387 = vst [vmem:[#allocation8 + $0xd8] sm:$0xff] %v1323
      %1388 = vst [vmem:[#allocation8 + $0xe0] sm:$0xff] %v1324
      %1389 = vst [vmem:[#allocation8 + $0xe8] sm:$0xff] %v1325
      %1390 = vst [vmem:[#allocation8 + $0xf0] sm:$0xff] %v1326
      %1391 = vst [vmem:[#allocation8 + $0xf8] sm:$0xff] %v1327
      %1392 = vst [vmem:[#allocation8 + $0x100] sm:$0xff] %v1328
      %1393 = vst [vmem:[#allocation8 + $0x108] sm:$0xff] %v1329
      %1394 = vst [vmem:[#allocation8 + $0x110] sm:$0xff] %v1330
      %1395 = vst [vmem:[#allocation8 + $0x118] sm:$0xff] %v1331
      %1396 = vst [vmem:[#allocation8 + $0x120] sm:$0xff] %v1332
      %1397 = vst [vmem:[#allocation8 + $0x128] sm:$0xff] %v1333
      %1398 = vst [vmem:[#allocation8 + $0x130] sm:$0xff] %v1334
      %1399 = vst [vmem:[#allocation8 + $0x138] sm:$0xff] %v1335
      %1400 = vst [vmem:[#allocation8 + $0x140] sm:$0xff] %v1336
      %1401 = vst [vmem:[#allocation8 + $0x148] sm:$0xff] %v1337
      %1402 = vst [vmem:[#allocation8 + $0x150] sm:$0xff] %v1338
      %1403 = vst [vmem:[#allocation8 + $0x158] sm:$0xff] %v1339
      %1404 = vst [vmem:[#allocation8 + $0x160] sm:$0xff] %v1340
      %1405 = vst [vmem:[#allocation8 + $0x168] sm:$0xff] %v1341
      %1406 = vst [vmem:[#allocation8 + $0x170] sm:$0xff] %v1342
      %1407 = vst [vmem:[#allocation8 + $0x178] sm:$0xff] %v1343
      %1408 = vst [vmem:[#allocation8 + $0x180] sm:$0xff] %v1344
      %1409 = vst [vmem:[#allocation8 + $0x188] sm:$0xff] %v1345
      %1410 = vst [vmem:[#allocation8 + $0x190] sm:$0xff] %v1346
      %1411 = vst [vmem:[#allocation8 + $0x198] sm:$0xff] %v1347
      %1412 = vst [vmem:[#allocation8 + $0x1a0] sm:$0xff] %v1348
      %1413 = vst [vmem:[#allocation8 + $0x1a8] sm:$0xff] %v1349
      %1414 = vst [vmem:[#allocation8 + $0x1b0] sm:$0xff] %v1350
      %1415 = vst [vmem:[#allocation8 + $0x1b8] sm:$0xff] %v1351
      %1416 = vst [vmem:[#allocation8 + $0x1c0] sm:$0xff] %v1352
      %1417 = vst [vmem:[#allocation8 + $0x1c8] sm:$0xff] %v1353
      %1418 = vst [vmem:[#allocation8 + $0x1d0] sm:$0xff] %v1354
      %1419 = vst [vmem:[#allocation8 + $0x1d8] sm:$0xff] %v1355
      %1420 = vst [vmem:[#allocation8 + $0x1e0] sm:$0xff] %v1356
      %1421 = vst [vmem:[#allocation8 + $0x1e8] sm:$0xff] %v1357
      %1422 = vst [vmem:[#allocation8 + $0x1f0] sm:$0xff] %v1358
      %1423 = vst [vmem:[#allocation8 + $0x1f8] sm:$0xff] %v1359
    $region37: #{tpu_custom_call.1} parent=1 // pred_fallthru
      _
    // Predicated region
    $region38: #{tpu_custom_call.1} parent=1 // pred_check
      _
    $region39: #{tpu_custom_call.1} parent=1 // pred_check_branch
      %1425 = sbr.rel (0) target = $region41
    $region40: #{tpu_custom_call.1} parent=1 // pred_region
      %s1427 = ssub.s32 8192, 8192
      %1428 = vsyncadd [#allocation4], %s1427
      %s1429 = sshll.u32 [#allocation8], 4
      %s1430 = int_to_ptr.vmem [resolvable:$true] %s1429
      %1435 = dma.vmem_to_hbm [thread:$0]  %s1430, 8192, %s4, [#allocation4], 256, 256, 16
    $region41: #{tpu_custom_call.1} parent=1 // pred_fallthru
      _
    // Predicated region
    $region42: #{tpu_custom_call.1} parent=1 // pred_check
      _
    $region43: #{tpu_custom_call.1} parent=1 // pred_check_branch
      %1437 = sbr.rel (0) target = $region45
    $region44: #{tpu_custom_call.1} parent=1 // pred_region
      %1438 = dma.done [#allocation4], 8192
    $region45: #{tpu_custom_call.1} parent=1 // pred_fallthru
      _
    %1439 = vsyncpa [#allocation3], 1
    %1440 = vsyncpa [#allocation6], 1
    %1441 = vsyncpa [#allocation4], 1

</llo_original>
